<compile_context>
chip_gen: v6e
topology: v6e:2x2x1
jax: 0.10.0
libtpu: 0.0.40
codegen_flags: <defaults>
</compile_context>

<pallas_src>
import math
from functools import partial

import jax
import jax.numpy as jnp
from jax.experimental import pallas as pl
from jax.experimental.pallas import tpu as pltpu


# ----------------------------- kernel helpers --------------------------------

def _layernorm(x, scale, shift, eps=1e-5):
    # f32 math; biased variance (matches torch var(unbiased=False)).
    mean = jnp.mean(x, axis=-1, keepdims=True)
    var = jnp.mean((x - mean) ** 2, axis=-1, keepdims=True)
    return (x - mean) * jax.lax.rsqrt(var + eps) * scale + shift


def _gelu_tanh(x):
    c = jnp.float32(math.sqrt(2.0 / math.pi))
    return 0.5 * x * (1.0 + jnp.tanh(c * (x + 0.044715 * x * x * x)))


# ----------------------------- kernel -----------------------------------------

def transformer_block_kernel(
    x_ref,
    ln1_s_ref, ln1_b_ref,
    wqkv_ref,
    wo_ref, bo_ref,
    ln2_s_ref, ln2_b_ref,
    w1_ref, b1_ref,
    w2_ref, b2_ref,
    out_ref,
    ctx_ref,                       # VMEM scratch: (bb, T, D) bf16
    *, num_heads: int,
):
    bb, T, D = x_ref.shape
    hd = D // num_heads
    bf16 = jnp.bfloat16

    x = x_ref[...].reshape(bb * T, D)                     # (bb*T, D) f32

    # ---- LN1 -> fused QKV projection (one MXU pass; 1/sqrt(hd) folded into wqkv) --
    xn = _layernorm(x, ln1_s_ref[...], ln1_b_ref[...])
    qkv = jnp.dot(xn.astype(bf16), wqkv_ref[...],
                  preferred_element_type=jnp.float32)     # (bb*T, 3D) f32 acc
    qkv = qkv.astype(bf16).reshape(bb, T, 3 * D)          # single full-tensor cast
    q = qkv[:, :, 0 * D:1 * D]                            # (bb, T, D) bf16 views
    k = qkv[:, :, 1 * D:2 * D]
    v = qkv[:, :, 2 * D:3 * D]

    # ---- causal mask as a (1, T, T) additive bias; broadcast happens in the add --
    row = jax.lax.broadcasted_iota(jnp.int32, (T, T), 0)
    col = jax.lax.broadcasted_iota(jnp.int32, (T, T), 1)
    mask_bias = jnp.where(col > row, jnp.float32(-1e30),
                          jnp.float32(0.0))[None, :, :]

    # scores[b,i,j] = sum_d q[b,i,d]*k[b,j,d]   (contract last dims, no k.T)
    dn_scores = (((2,), (2,)), ((0,), (0,)))
    # ctx[b,i,d]   = sum_j p[b,i,j]*v[b,j,d]
    dn_ctx = (((2,), (1,)), ((0,), (0,)))

    for h in range(num_heads):                            # static unroll over heads
        sl = slice(h * hd, (h + 1) * hd)
        s = jax.lax.dot_general(q[:, :, sl], k[:, :, sl], dn_scores,
                                preferred_element_type=jnp.float32)  # (bb,T,T) f32
        s = s + mask_bias
        s = s - jnp.max(s, axis=-1, keepdims=True)
        p = jnp.exp(s)
        p = p * pl.reciprocal(jnp.sum(p, axis=-1, keepdims=True), approx=True)

        ctx_h = jax.lax.dot_general(p.astype(bf16), v[:, :, sl], dn_ctx,
                                    preferred_element_type=jnp.float32)  # (bb,T,hd)
        ctx_ref[:, :, sl] = ctx_h.astype(bf16)            # bf16 scratch, no concat

    ctx = ctx_ref[...].reshape(bb * T, D)                 # bf16, consumed directly

    # ---- output projection + residual ----------------------------------------
    attn = jnp.dot(ctx, wo_ref[...],
                   preferred_element_type=jnp.float32) + bo_ref[...]
    x1 = attn + x                                         # (bb*T, D) f32

    # ---- LN2 -> FeedForward(GELU) -> residual ---------------------------------
    x2n = _layernorm(x1, ln2_s_ref[...], ln2_b_ref[...])
    h1 = jnp.dot(x2n.astype(bf16), w1_ref[...],
                 preferred_element_type=jnp.float32) + b1_ref[...]
    h1 = _gelu_tanh(h1)
    ff = jnp.dot(h1.astype(bf16), w2_ref[...],
                 preferred_element_type=jnp.float32) + b2_ref[...]

    out_ref[...] = (ff + x1).reshape(bb, T, D)


# ----------------------------- wrapper ---------------------------------------

def _vmem_capacity_bytes():
    try:
        return int(pltpu.get_tpu_info().vmem_capacity_bytes)
    except Exception:
        return 64 * 1024 * 1024          # conservative (v7x per-core VMEM)


def _activation_bytes(bb, T, D):
    rows = bb * T
    return (rows * 3 * D * 4             # f32 qkv accumulator
            + 2 * bb * T * T * 4         # f32 scores + exp temp (one head live)
            + rows * D * 2               # bf16 ctx scratch
            + rows * 4 * D * 4           # f32 FF hidden
            + 2 * 2 * rows * D * 4)      # double-buffered x / out blocks


def _pick_batch_block(B, T, D, vmem_cap, weight_bytes):
    """Largest divisor of B whose activations fit the VMEM budget, preferring a
    grid with >= 2 steps so v7x's second TensorCore gets work."""
    budget = max(vmem_cap - weight_bytes - (8 << 20), vmem_cap // 4)
    divisors = [d for d in range(1, B + 1) if B % d == 0]
    fitting = [d for d in divisors if _activation_bytes(d, T, D) <= budget] or [1]
    multi_step = [d for d in fitting if B // d >= 2]
    return max(multi_step) if multi_step else max(fitting)


def transformer_block(x, params, num_heads, *, batch_block=None):
    """x: (B, T, D) float32. params: dict of f32 arrays (see init_params)."""
    B, T, D = x.shape
    hd = D // num_heads
    bf16 = jnp.bfloat16

    # Fused QKV weight (D, 3D), bf16, with the 1/sqrt(hd) attention scale folded
    # into the q-columns (one-time constant transform, saves an in-kernel vmul).
    scale = jnp.float32(1.0 / math.sqrt(hd))
    wqkv = jnp.concatenate(
        [params["wq"] * scale, params["wk"], params["wv"]], axis=1).astype(bf16)

    weights = [
        params["ln1_scale"], params["ln1_shift"],
        wqkv,
        params["wo"].astype(bf16), params["bo"],
        params["ln2_scale"], params["ln2_shift"],
        params["w1"].astype(bf16), params["b1"],
        params["w2"].astype(bf16), params["b2"],
    ]
    weight_bytes = sum(int(w.size) * w.dtype.itemsize for w in weights)

    vmem_cap = _vmem_capacity_bytes()
    if batch_block is None:
        bb = _pick_batch_block(B, T, D, vmem_cap, weight_bytes)
    else:
        bb = batch_block
    assert B % bb == 0, "batch_block must divide B"

    # Budget the scoped VMEM against the actual chip (64 MiB on v7x, 128 on v5e/v6e).
    vmem_limit = int(max(32 << 20, min(vmem_cap * 3 // 4, 100 << 20)))

    def full_spec(arr):
        nd = arr.ndim
        # Grid-invariant weight blocks (constant index_map) -> fetched once;
        # single-buffered so they don't pay the default double-buffer VMEM tax.
        return pl.BlockSpec(arr.shape, lambda i, _nd=nd: (0,) * _nd,
                            pipeline_mode=pl.Buffered(1))

    in_specs = ([pl.BlockSpec((bb, T, D), lambda i: (i, 0, 0))]
                + [full_spec(w) for w in weights])
    out_spec = pl.BlockSpec((bb, T, D), lambda i: (i, 0, 0))

    kernel = partial(transformer_block_kernel, num_heads=num_heads)

    return pl.pallas_call(
        kernel,
        out_shape=jax.ShapeDtypeStruct((B, T, D), jnp.float32),
        grid=(B // bb,),
        in_specs=in_specs,
        out_specs=out_spec,
        scratch_shapes=[pltpu.VMEM((bb, T, D), jnp.bfloat16)],
        compiler_params=pltpu.CompilerParams(
            dimension_semantics=("parallel",),
            vmem_limit_bytes=vmem_limit,
        ),
    )(x, *weights)


# ----------------------------- param init ------------------------------------

def init_params(key, emb_dim):
    D = emb_dim
    ks = jax.random.split(key, 12)

    def lin_w(k, fan_in, fan_out):
        # stored (in, out): y = x @ W + b  (== torch Linear with W transposed)
        return (jax.random.normal(k, (fan_in, fan_out), jnp.float32)
                / jnp.sqrt(jnp.float32(fan_in)))

    return {
        "ln1_scale": 1.0 + 0.1 * jax.random.normal(ks[6], (1, D), jnp.float32),
        "ln1_shift": 0.1 * jax.random.normal(ks[7], (1, D), jnp.float32),
        "wq": lin_w(ks[0], D, D),
        "wk": lin_w(ks[1], D, D),
        "wv": lin_w(ks[2], D, D),          # qkv_bias=False -> no q/k/v biases
        "wo": lin_w(ks[3], D, D),
        "bo": 0.1 * jax.random.normal(ks[8], (1, D), jnp.float32),
        "ln2_scale": 1.0 + 0.1 * jax.random.normal(ks[9], (1, D), jnp.float32),
        "ln2_shift": 0.1 * jax.random.normal(ks[10], (1, D), jnp.float32),
        "w1": lin_w(ks[4], D, 4 * D),
        "b1": 0.1 * jax.random.normal(ks[11], (1, 4 * D), jnp.float32),
        "w2": lin_w(ks[5], 4 * D, D),
        "b2": jnp.zeros((1, D), jnp.float32),
    }


# ----------------------------- reference (pure JAX, same dtype policy) --------

def reference_block(x, p, num_heads):
    f32 = jnp.float32
    bf = lambda a: a.astype(jnp.bfloat16)

    def ln(x, s, b):
        m = jnp.mean(x, axis=-1, keepdims=True)
        v = jnp.mean((x - m) ** 2, axis=-1, keepdims=True)
        return s * (x - m) / jnp.sqrt(v + 1e-5) + b

    B, T, D = x.shape
    hd = D // num_heads
    scale = 1.0 / jnp.sqrt(f32(hd))

    xn = ln(x, p["ln1_scale"], p["ln1_shift"])
    q = jnp.einsum("btd,de->bte", bf(xn), bf(p["wq"]), preferred_element_type=f32) * scale
    k = jnp.einsum("btd,de->bte", bf(xn), bf(p["wk"]), preferred_element_type=f32)
    v = jnp.einsum("btd,de->bte", bf(xn), bf(p["wv"]), preferred_element_type=f32)
    q = q.reshape(B, T, num_heads, hd).transpose(0, 2, 1, 3)
    k = k.reshape(B, T, num_heads, hd).transpose(0, 2, 1, 3)
    v = v.reshape(B, T, num_heads, hd).transpose(0, 2, 1, 3)
    scores = jnp.einsum("bhqd,bhkd->bhqk", bf(q), bf(k), preferred_element_type=f32)
    mask = jnp.triu(jnp.ones((T, T), bool), k=1)
    scores = jnp.where(mask, -jnp.inf, scores)
    w = jax.nn.softmax(scores, axis=-1)
    ctx = jnp.einsum("bhqk,bhkd->bhqd", bf(w), bf(v), preferred_element_type=f32)
    ctx = ctx.transpose(0, 2, 1, 3).reshape(B, T, D)
    attn = jnp.einsum("btd,de->bte", bf(ctx), bf(p["wo"]), preferred_element_type=f32) + p["bo"]
    x1 = attn + x
    x2n = ln(x1, p["ln2_scale"], p["ln2_shift"])
    h1 = jnp.einsum("btd,de->bte", bf(x2n), bf(p["w1"]), preferred_element_type=f32) + p["b1"]
    c = jnp.sqrt(f32(2.0 / math.pi))
    h1 = 0.5 * h1 * (1 + jnp.tanh(c * (h1 + 0.044715 * h1 ** 3)))
    ff = jnp.einsum("btd,de->bte", bf(h1), bf(p["w2"]), preferred_element_type=f32) + p["b2"]
    return ff + x1


# ----------------------------- main -------------------------------------------

if __name__ == "__main__":
    cfg = dict(emb_dim=32, context_length=8, n_heads=4, drop_rate=0.0, qkv_bias=False)
    B, T, D = 2, cfg["context_length"], cfg["emb_dim"]

    key = jax.random.PRNGKey(0)
    kx, kp = jax.random.split(key)
    x = jax.random.normal(kx, (B, T, D), jnp.float32)
    params = init_params(kp, D)

    out = transformer_block(x, params, cfg["n_heads"])
    out = jax.block_until_ready(out)

    ref = reference_block(x, params, cfg["n_heads"])
    assert out.shape == (B, T, D)
    assert jnp.allclose(out, ref, atol=2e-2, rtol=2e-2), "mismatch vs reference"

    print("KERNEL_OK")
</pallas_src>

<mosaic_0001>
module attributes {stable_mosaic.version = 11 : i64} {
  func.func @transformer_block_kernel(%arg0: i32, %arg1: memref<1x8x32xf32, #tpu.memory_space<vmem>>, %arg2: memref<1x32xf32, #tpu.memory_space<vmem>>, %arg3: memref<1x32xf32, #tpu.memory_space<vmem>>, %arg4: memref<32x96xbf16, #tpu.memory_space<vmem>>, %arg5: memref<32x32xbf16, #tpu.memory_space<vmem>>, %arg6: memref<1x32xf32, #tpu.memory_space<vmem>>, %arg7: memref<1x32xf32, #tpu.memory_space<vmem>>, %arg8: memref<1x32xf32, #tpu.memory_space<vmem>>, %arg9: memref<32x128xbf16, #tpu.memory_space<vmem>>, %arg10: memref<1x128xf32, #tpu.memory_space<vmem>>, %arg11: memref<128x32xbf16, #tpu.memory_space<vmem>>, %arg12: memref<1x32xf32, #tpu.memory_space<vmem>>, %arg13: memref<1x8x32xf32, #tpu.memory_space<vmem>>, %arg14: memref<1x8x32xbf16, #tpu.memory_space<vmem>>) attributes {dimension_semantics = [#tpu.dimension_semantics<parallel>], iteration_bounds = array<i64: 2>, scalar_prefetch = 0 : i64, scratch_operands = 1 : i64, tpu.core_type = #tpu.core_type<tc>, window_params = [{transform_indices = @transform_0, window_bounds = array<i64: 1, 8, 32>}, {pipeline_mode = #tpu.pipeline_mode<synchronous>, transform_indices = @transform_1, window_bounds = array<i64: 1, 32>}, {pipeline_mode = #tpu.pipeline_mode<synchronous>, transform_indices = @transform_2, window_bounds = array<i64: 1, 32>}, {pipeline_mode = #tpu.pipeline_mode<synchronous>, transform_indices = @transform_3, window_bounds = array<i64: 32, 96>}, {pipeline_mode = #tpu.pipeline_mode<synchronous>, transform_indices = @transform_4, window_bounds = array<i64: 32, 32>}, {pipeline_mode = #tpu.pipeline_mode<synchronous>, transform_indices = @transform_5, window_bounds = array<i64: 1, 32>}, {pipeline_mode = #tpu.pipeline_mode<synchronous>, transform_indices = @transform_6, window_bounds = array<i64: 1, 32>}, {pipeline_mode = #tpu.pipeline_mode<synchronous>, transform_indices = @transform_7, window_bounds = array<i64: 1, 32>}, {pipeline_mode = #tpu.pipeline_mode<synchronous>, transform_indices = @transform_8, window_bounds = array<i64: 32, 128>}, {pipeline_mode = #tpu.pipeline_mode<synchronous>, transform_indices = @transform_9, window_bounds = array<i64: 1, 128>}, {pipeline_mode = #tpu.pipeline_mode<synchronous>, transform_indices = @transform_10, window_bounds = array<i64: 128, 32>}, {pipeline_mode = #tpu.pipeline_mode<synchronous>, transform_indices = @transform_11, window_bounds = array<i64: 1, 32>}, {transform_indices = @transform_12, window_bounds = array<i64: 1, 8, 32>}]} {
    %c0 = arith.constant 0 : index
    %c0_0 = arith.constant 0 : index
    %c0_1 = arith.constant 0 : index
    %0 = vector.load %arg1[%c0, %c0_0, %c0_1] : memref<1x8x32xf32, #tpu.memory_space<vmem>>, vector<1x8x32xf32>
    %1 = vector.shape_cast %0 : vector<1x8x32xf32> to vector<8x32xf32>
    %c0_2 = arith.constant 0 : index
    %c0_3 = arith.constant 0 : index
    %2 = vector.load %arg2[%c0_2, %c0_3] : memref<1x32xf32, #tpu.memory_space<vmem>>, vector<1x32xf32>
    %c0_4 = arith.constant 0 : index
    %c0_5 = arith.constant 0 : index
    %3 = vector.load %arg3[%c0_4, %c0_5] : memref<1x32xf32, #tpu.memory_space<vmem>>, vector<1x32xf32>
    %cst = arith.constant dense<0.000000e+00> : vector<8xf32>
    %4 = vector.multi_reduction <add>, %1, %cst [1] : vector<8x32xf32> to vector<8xf32>
    %5 = vector.shape_cast %4 : vector<8xf32> to vector<8x1xf32>
    %cst_6 = arith.constant 3.200000e+01 : f32
    %6 = vector.broadcast %cst_6 : f32 to vector<8x1xf32>
    %7 = arith.divf %5, %6 : vector<8x1xf32>
    %8 = vector.broadcast %7 : vector<8x1xf32> to vector<8x32xf32>
    %9 = arith.subf %1, %8 : vector<8x32xf32>
    %10 = arith.mulf %9, %9 : vector<8x32xf32>
    %cst_7 = arith.constant dense<0.000000e+00> : vector<8xf32>
    %11 = vector.multi_reduction <add>, %10, %cst_7 [1] : vector<8x32xf32> to vector<8xf32>
    %12 = vector.shape_cast %11 : vector<8xf32> to vector<8x1xf32>
    %cst_8 = arith.constant 3.200000e+01 : f32
    %13 = vector.broadcast %cst_8 : f32 to vector<8x1xf32>
    %14 = arith.divf %12, %13 : vector<8x1xf32>
    %15 = vector.broadcast %7 : vector<8x1xf32> to vector<8x32xf32>
    %16 = arith.subf %1, %15 : vector<8x32xf32>
    %cst_9 = arith.constant 9.99999974E-6 : f32
    %17 = vector.broadcast %cst_9 : f32 to vector<8x1xf32>
    %18 = arith.addf %14, %17 : vector<8x1xf32>
    %19 = math.rsqrt %18 : vector<8x1xf32>
    %20 = vector.broadcast %19 : vector<8x1xf32> to vector<8x32xf32>
    %21 = arith.mulf %16, %20 : vector<8x32xf32>
    %22 = vector.broadcast %2 : vector<1x32xf32> to vector<8x32xf32>
    %23 = arith.mulf %21, %22 : vector<8x32xf32>
    %24 = vector.broadcast %3 : vector<1x32xf32> to vector<8x32xf32>
    %25 = arith.addf %23, %24 : vector<8x32xf32>
    %26 = arith.truncf %25 : vector<8x32xf32> to vector<8x32xbf16>
    %c0_10 = arith.constant 0 : index
    %c0_11 = arith.constant 0 : index
    %27 = vector.load %arg4[%c0_10, %c0_11] : memref<32x96xbf16, #tpu.memory_space<vmem>>, vector<32x96xbf16>
    %cst_12 = arith.constant dense<0.000000e+00> : vector<8x96xf32>
    %28 = tpu.matmul %26, %27, %cst_12 {dimension_numbers = #tpu.dot_dimension_numbers<[1], [0], [0], [1], [0, 0, 1, 1], [], []>} : vector<8x32xbf16>, vector<32x96xbf16>, vector<8x96xf32> -> vector<8x96xf32>
    %29 = arith.truncf %28 : vector<8x96xf32> to vector<8x96xbf16>
    %30 = vector.shape_cast %29 : vector<8x96xbf16> to vector<1x8x96xbf16>
    %31 = vector.extract_strided_slice %30 {offsets = [0, 0, 0], sizes = [1, 8, 32], strides = [1, 1, 1]} : vector<1x8x96xbf16> to vector<1x8x32xbf16>
    %32 = vector.extract_strided_slice %30 {offsets = [0, 0, 32], sizes = [1, 8, 32], strides = [1, 1, 1]} : vector<1x8x96xbf16> to vector<1x8x32xbf16>
    %33 = vector.extract_strided_slice %30 {offsets = [0, 0, 64], sizes = [1, 8, 32], strides = [1, 1, 1]} : vector<1x8x96xbf16> to vector<1x8x32xbf16>
    %34 = tpu.iota {dimensions = array<i32: 0>} : vector<8x8xi32>
    %35 = tpu.iota {dimensions = array<i32: 1>} : vector<8x8xi32>
    %36 = arith.cmpi sgt, %35, %34 : vector<8x8xi32>
    %cst_13 = arith.constant -1.000000e+30 : f32
    %cst_14 = arith.constant 0.000000e+00 : f32
    %37 = vector.broadcast %cst_13 : f32 to vector<8x8xf32>
    %38 = vector.broadcast %cst_14 : f32 to vector<8x8xf32>
    %39 = arith.select %36, %37, %38 : vector<8x8xi1>, vector<8x8xf32>
    %40 = vector.shape_cast %39 : vector<8x8xf32> to vector<1x8x8xf32>
    %41 = vector.extract_strided_slice %31 {offsets = [0, 0, 0], sizes = [1, 8, 8], strides = [1, 1, 1]} : vector<1x8x32xbf16> to vector<1x8x8xbf16>
    %42 = vector.extract_strided_slice %32 {offsets = [0, 0, 0], sizes = [1, 8, 8], strides = [1, 1, 1]} : vector<1x8x32xbf16> to vector<1x8x8xbf16>
    %cst_15 = arith.constant dense<0.000000e+00> : vector<1x8x8xf32>
    %43 = tpu.matmul %41, %42, %cst_15 {dimension_numbers = #tpu.dot_dimension_numbers<[2], [2], [1], [1], [0, 0, 0, 1, 1, 1], [0], [0]>} : vector<1x8x8xbf16>, vector<1x8x8xbf16>, vector<1x8x8xf32> -> vector<1x8x8xf32>
    %44 = arith.addf %43, %40 : vector<1x8x8xf32>
    %cst_16 = arith.constant dense<0xFF800000> : vector<1x8xf32>
    %45 = vector.multi_reduction <maximumf>, %44, %cst_16 [2] : vector<1x8x8xf32> to vector<1x8xf32>
    %46 = vector.shape_cast %45 : vector<1x8xf32> to vector<1x8x1xf32>
    %47 = vector.broadcast %46 : vector<1x8x1xf32> to vector<1x8x8xf32>
    %48 = arith.subf %44, %47 : vector<1x8x8xf32>
    %49 = math.exp %48 : vector<1x8x8xf32>
    %cst_17 = arith.constant dense<0.000000e+00> : vector<1x8xf32>
    %50 = vector.multi_reduction <add>, %49, %cst_17 [2] : vector<1x8x8xf32> to vector<1x8xf32>
    %51 = vector.shape_cast %50 : vector<1x8xf32> to vector<1x8x1xf32>
    %52 = tpu.reciprocal %51 {approx = true} : vector<1x8x1xf32> -> vector<1x8x1xf32>
    %53 = vector.broadcast %52 : vector<1x8x1xf32> to vector<1x8x8xf32>
    %54 = arith.mulf %49, %53 : vector<1x8x8xf32>
    %55 = arith.truncf %54 : vector<1x8x8xf32> to vector<1x8x8xbf16>
    %56 = vector.extract_strided_slice %33 {offsets = [0, 0, 0], sizes = [1, 8, 8], strides = [1, 1, 1]} : vector<1x8x32xbf16> to vector<1x8x8xbf16>
    %cst_18 = arith.constant dense<0.000000e+00> : vector<1x8x8xf32>
    %57 = tpu.matmul %55, %56, %cst_18 {dimension_numbers = #tpu.dot_dimension_numbers<[2], [1], [1], [2], [0, 0, 0, 1, 1, 2], [0], [0]>} : vector<1x8x8xbf16>, vector<1x8x8xbf16>, vector<1x8x8xf32> -> vector<1x8x8xf32>
    %58 = arith.truncf %57 : vector<1x8x8xf32> to vector<1x8x8xbf16>
    %c0_19 = arith.constant 0 : index
    %c0_20 = arith.constant 0 : index
    %c0_21 = arith.constant 0 : index
    %59 = vector.load %arg14[%c0_19, %c0_20, %c0_21] : memref<1x8x32xbf16, #tpu.memory_space<vmem>>, vector<1x8x8xbf16>
    tpu.vector_store %arg14[%c0_19, %c0_20, %c0_21], %58 {strides = array<i32>} : memref<1x8x32xbf16, #tpu.memory_space<vmem>>, vector<1x8x8xbf16>,
    %60 = vector.extract_strided_slice %31 {offsets = [0, 0, 8], sizes = [1, 8, 8], strides = [1, 1, 1]} : vector<1x8x32xbf16> to vector<1x8x8xbf16>
    %61 = vector.extract_strided_slice %32 {offsets = [0, 0, 8], sizes = [1, 8, 8], strides = [1, 1, 1]} : vector<1x8x32xbf16> to vector<1x8x8xbf16>
    %cst_22 = arith.constant dense<0.000000e+00> : vector<1x8x8xf32>
    %62 = tpu.matmul %60, %61, %cst_22 {dimension_numbers = #tpu.dot_dimension_numbers<[2], [2], [1], [1], [0, 0, 0, 1, 1, 1], [0], [0]>} : vector<1x8x8xbf16>, vector<1x8x8xbf16>, vector<1x8x8xf32> -> vector<1x8x8xf32>
    %63 = arith.addf %62, %40 : vector<1x8x8xf32>
    %cst_23 = arith.constant dense<0xFF800000> : vector<1x8xf32>
    %64 = vector.multi_reduction <maximumf>, %63, %cst_23 [2] : vector<1x8x8xf32> to vector<1x8xf32>
    %65 = vector.shape_cast %64 : vector<1x8xf32> to vector<1x8x1xf32>
    %66 = vector.broadcast %65 : vector<1x8x1xf32> to vector<1x8x8xf32>
    %67 = arith.subf %63, %66 : vector<1x8x8xf32>
    %68 = math.exp %67 : vector<1x8x8xf32>
    %cst_24 = arith.constant dense<0.000000e+00> : vector<1x8xf32>
    %69 = vector.multi_reduction <add>, %68, %cst_24 [2] : vector<1x8x8xf32> to vector<1x8xf32>
    %70 = vector.shape_cast %69 : vector<1x8xf32> to vector<1x8x1xf32>
    %71 = tpu.reciprocal %70 {approx = true} : vector<1x8x1xf32> -> vector<1x8x1xf32>
    %72 = vector.broadcast %71 : vector<1x8x1xf32> to vector<1x8x8xf32>
    %73 = arith.mulf %68, %72 : vector<1x8x8xf32>
    %74 = arith.truncf %73 : vector<1x8x8xf32> to vector<1x8x8xbf16>
    %75 = vector.extract_strided_slice %33 {offsets = [0, 0, 8], sizes = [1, 8, 8], strides = [1, 1, 1]} : vector<1x8x32xbf16> to vector<1x8x8xbf16>
    %cst_25 = arith.constant dense<0.000000e+00> : vector<1x8x8xf32>
    %76 = tpu.matmul %74, %75, %cst_25 {dimension_numbers = #tpu.dot_dimension_numbers<[2], [1], [1], [2], [0, 0, 0, 1, 1, 2], [0], [0]>} : vector<1x8x8xbf16>, vector<1x8x8xbf16>, vector<1x8x8xf32> -> vector<1x8x8xf32>
    %77 = arith.truncf %76 : vector<1x8x8xf32> to vector<1x8x8xbf16>
    %c0_26 = arith.constant 0 : index
    %c0_27 = arith.constant 0 : index
    %c8 = arith.constant 8 : index
    %78 = vector.load %arg14[%c0_26, %c0_27, %c8] : memref<1x8x32xbf16, #tpu.memory_space<vmem>>, vector<1x8x8xbf16>
    tpu.vector_store %arg14[%c0_26, %c0_27, %c8], %77 {strides = array<i32>} : memref<1x8x32xbf16, #tpu.memory_space<vmem>>, vector<1x8x8xbf16>,
    %79 = vector.extract_strided_slice %31 {offsets = [0, 0, 16], sizes = [1, 8, 8], strides = [1, 1, 1]} : vector<1x8x32xbf16> to vector<1x8x8xbf16>
    %80 = vector.extract_strided_slice %32 {offsets = [0, 0, 16], sizes = [1, 8, 8], strides = [1, 1, 1]} : vector<1x8x32xbf16> to vector<1x8x8xbf16>
    %cst_28 = arith.constant dense<0.000000e+00> : vector<1x8x8xf32>
    %81 = tpu.matmul %79, %80, %cst_28 {dimension_numbers = #tpu.dot_dimension_numbers<[2], [2], [1], [1], [0, 0, 0, 1, 1, 1], [0], [0]>} : vector<1x8x8xbf16>, vector<1x8x8xbf16>, vector<1x8x8xf32> -> vector<1x8x8xf32>
    %82 = arith.addf %81, %40 : vector<1x8x8xf32>
    %cst_29 = arith.constant dense<0xFF800000> : vector<1x8xf32>
    %83 = vector.multi_reduction <maximumf>, %82, %cst_29 [2] : vector<1x8x8xf32> to vector<1x8xf32>
    %84 = vector.shape_cast %83 : vector<1x8xf32> to vector<1x8x1xf32>
    %85 = vector.broadcast %84 : vector<1x8x1xf32> to vector<1x8x8xf32>
    %86 = arith.subf %82, %85 : vector<1x8x8xf32>
    %87 = math.exp %86 : vector<1x8x8xf32>
    %cst_30 = arith.constant dense<0.000000e+00> : vector<1x8xf32>
    %88 = vector.multi_reduction <add>, %87, %cst_30 [2] : vector<1x8x8xf32> to vector<1x8xf32>
    %89 = vector.shape_cast %88 : vector<1x8xf32> to vector<1x8x1xf32>
    %90 = tpu.reciprocal %89 {approx = true} : vector<1x8x1xf32> -> vector<1x8x1xf32>
    %91 = vector.broadcast %90 : vector<1x8x1xf32> to vector<1x8x8xf32>
    %92 = arith.mulf %87, %91 : vector<1x8x8xf32>
    %93 = arith.truncf %92 : vector<1x8x8xf32> to vector<1x8x8xbf16>
    %94 = vector.extract_strided_slice %33 {offsets = [0, 0, 16], sizes = [1, 8, 8], strides = [1, 1, 1]} : vector<1x8x32xbf16> to vector<1x8x8xbf16>
    %cst_31 = arith.constant dense<0.000000e+00> : vector<1x8x8xf32>
    %95 = tpu.matmul %93, %94, %cst_31 {dimension_numbers = #tpu.dot_dimension_numbers<[2], [1], [1], [2], [0, 0, 0, 1, 1, 2], [0], [0]>} : vector<1x8x8xbf16>, vector<1x8x8xbf16>, vector<1x8x8xf32> -> vector<1x8x8xf32>
    %96 = arith.truncf %95 : vector<1x8x8xf32> to vector<1x8x8xbf16>
    %c0_32 = arith.constant 0 : index
    %c0_33 = arith.constant 0 : index
    %c16 = arith.constant 16 : index
    %97 = vector.load %arg14[%c0_32, %c0_33, %c16] : memref<1x8x32xbf16, #tpu.memory_space<vmem>>, vector<1x8x8xbf16>
    tpu.vector_store %arg14[%c0_32, %c0_33, %c16], %96 {strides = array<i32>} : memref<1x8x32xbf16, #tpu.memory_space<vmem>>, vector<1x8x8xbf16>,
    %98 = vector.extract_strided_slice %31 {offsets = [0, 0, 24], sizes = [1, 8, 8], strides = [1, 1, 1]} : vector<1x8x32xbf16> to vector<1x8x8xbf16>
    %99 = vector.extract_strided_slice %32 {offsets = [0, 0, 24], sizes = [1, 8, 8], strides = [1, 1, 1]} : vector<1x8x32xbf16> to vector<1x8x8xbf16>
    %cst_34 = arith.constant dense<0.000000e+00> : vector<1x8x8xf32>
    %100 = tpu.matmul %98, %99, %cst_34 {dimension_numbers = #tpu.dot_dimension_numbers<[2], [2], [1], [1], [0, 0, 0, 1, 1, 1], [0], [0]>} : vector<1x8x8xbf16>, vector<1x8x8xbf16>, vector<1x8x8xf32> -> vector<1x8x8xf32>
    %101 = arith.addf %100, %40 : vector<1x8x8xf32>
    %cst_35 = arith.constant dense<0xFF800000> : vector<1x8xf32>
    %102 = vector.multi_reduction <maximumf>, %101, %cst_35 [2] : vector<1x8x8xf32> to vector<1x8xf32>
    %103 = vector.shape_cast %102 : vector<1x8xf32> to vector<1x8x1xf32>
    %104 = vector.broadcast %103 : vector<1x8x1xf32> to vector<1x8x8xf32>
    %105 = arith.subf %101, %104 : vector<1x8x8xf32>
    %106 = math.exp %105 : vector<1x8x8xf32>
    %cst_36 = arith.constant dense<0.000000e+00> : vector<1x8xf32>
    %107 = vector.multi_reduction <add>, %106, %cst_36 [2] : vector<1x8x8xf32> to vector<1x8xf32>
    %108 = vector.shape_cast %107 : vector<1x8xf32> to vector<1x8x1xf32>
    %109 = tpu.reciprocal %108 {approx = true} : vector<1x8x1xf32> -> vector<1x8x1xf32>
    %110 = vector.broadcast %109 : vector<1x8x1xf32> to vector<1x8x8xf32>
    %111 = arith.mulf %106, %110 : vector<1x8x8xf32>
    %112 = arith.truncf %111 : vector<1x8x8xf32> to vector<1x8x8xbf16>
    %113 = vector.extract_strided_slice %33 {offsets = [0, 0, 24], sizes = [1, 8, 8], strides = [1, 1, 1]} : vector<1x8x32xbf16> to vector<1x8x8xbf16>
    %cst_37 = arith.constant dense<0.000000e+00> : vector<1x8x8xf32>
    %114 = tpu.matmul %112, %113, %cst_37 {dimension_numbers = #tpu.dot_dimension_numbers<[2], [1], [1], [2], [0, 0, 0, 1, 1, 2], [0], [0]>} : vector<1x8x8xbf16>, vector<1x8x8xbf16>, vector<1x8x8xf32> -> vector<1x8x8xf32>
    %115 = arith.truncf %114 : vector<1x8x8xf32> to vector<1x8x8xbf16>
    %c0_38 = arith.constant 0 : index
    %c0_39 = arith.constant 0 : index
    %c24 = arith.constant 24 : index
    %116 = vector.load %arg14[%c0_38, %c0_39, %c24] : memref<1x8x32xbf16, #tpu.memory_space<vmem>>, vector<1x8x8xbf16>
    tpu.vector_store %arg14[%c0_38, %c0_39, %c24], %115 {strides = array<i32>} : memref<1x8x32xbf16, #tpu.memory_space<vmem>>, vector<1x8x8xbf16>,
    %c0_40 = arith.constant 0 : index
    %c0_41 = arith.constant 0 : index
    %c0_42 = arith.constant 0 : index
    %117 = vector.load %arg14[%c0_40, %c0_41, %c0_42] : memref<1x8x32xbf16, #tpu.memory_space<vmem>>, vector<1x8x32xbf16>
    %118 = vector.shape_cast %117 : vector<1x8x32xbf16> to vector<8x32xbf16>
    %c0_43 = arith.constant 0 : index
    %c0_44 = arith.constant 0 : index
    %119 = vector.load %arg5[%c0_43, %c0_44] : memref<32x32xbf16, #tpu.memory_space<vmem>>, vector<32x32xbf16>
    %cst_45 = arith.constant dense<0.000000e+00> : vector<8x32xf32>
    %120 = tpu.matmul %118, %119, %cst_45 {dimension_numbers = #tpu.dot_dimension_numbers<[1], [0], [0], [1], [0, 0, 1, 1], [], []>} : vector<8x32xbf16>, vector<32x32xbf16>, vector<8x32xf32> -> vector<8x32xf32>
    %c0_46 = arith.constant 0 : index
    %c0_47 = arith.constant 0 : index
    %121 = vector.load %arg6[%c0_46, %c0_47] : memref<1x32xf32, #tpu.memory_space<vmem>>, vector<1x32xf32>
    %122 = vector.broadcast %121 : vector<1x32xf32> to vector<8x32xf32>
    %123 = arith.addf %120, %122 : vector<8x32xf32>
    %124 = arith.addf %123, %1 : vector<8x32xf32>
    %c0_48 = arith.constant 0 : index
    %c0_49 = arith.constant 0 : index
    %125 = vector.load %arg7[%c0_48, %c0_49] : memref<1x32xf32, #tpu.memory_space<vmem>>, vector<1x32xf32>
    %c0_50 = arith.constant 0 : index
    %c0_51 = arith.constant 0 : index
    %126 = vector.load %arg8[%c0_50, %c0_51] : memref<1x32xf32, #tpu.memory_space<vmem>>, vector<1x32xf32>
    %cst_52 = arith.constant dense<0.000000e+00> : vector<8xf32>
    %127 = vector.multi_reduction <add>, %124, %cst_52 [1] : vector<8x32xf32> to vector<8xf32>
    %128 = vector.shape_cast %127 : vector<8xf32> to vector<8x1xf32>
    %cst_53 = arith.constant 3.200000e+01 : f32
    %129 = vector.broadcast %cst_53 : f32 to vector<8x1xf32>
    %130 = arith.divf %128, %129 : vector<8x1xf32>
    %131 = vector.broadcast %130 : vector<8x1xf32> to vector<8x32xf32>
    %132 = arith.subf %124, %131 : vector<8x32xf32>
    %133 = arith.mulf %132, %132 : vector<8x32xf32>
    %cst_54 = arith.constant dense<0.000000e+00> : vector<8xf32>
    %134 = vector.multi_reduction <add>, %133, %cst_54 [1] : vector<8x32xf32> to vector<8xf32>
    %135 = vector.shape_cast %134 : vector<8xf32> to vector<8x1xf32>
    %cst_55 = arith.constant 3.200000e+01 : f32
    %136 = vector.broadcast %cst_55 : f32 to vector<8x1xf32>
    %137 = arith.divf %135, %136 : vector<8x1xf32>
    %138 = vector.broadcast %130 : vector<8x1xf32> to vector<8x32xf32>
    %139 = arith.subf %124, %138 : vector<8x32xf32>
    %cst_56 = arith.constant 9.99999974E-6 : f32
    %140 = vector.broadcast %cst_56 : f32 to vector<8x1xf32>
    %141 = arith.addf %137, %140 : vector<8x1xf32>
    %142 = math.rsqrt %141 : vector<8x1xf32>
    %143 = vector.broadcast %142 : vector<8x1xf32> to vector<8x32xf32>
    %144 = arith.mulf %139, %143 : vector<8x32xf32>
    %145 = vector.broadcast %125 : vector<1x32xf32> to vector<8x32xf32>
    %146 = arith.mulf %144, %145 : vector<8x32xf32>
    %147 = vector.broadcast %126 : vector<1x32xf32> to vector<8x32xf32>
    %148 = arith.addf %146, %147 : vector<8x32xf32>
    %149 = arith.truncf %148 : vector<8x32xf32> to vector<8x32xbf16>
    %c0_57 = arith.constant 0 : index
    %c0_58 = arith.constant 0 : index
    %150 = vector.load %arg9[%c0_57, %c0_58] : memref<32x128xbf16, #tpu.memory_space<vmem>>, vector<32x128xbf16>
    %cst_59 = arith.constant dense<0.000000e+00> : vector<8x128xf32>
    %151 = tpu.matmul %149, %150, %cst_59 {dimension_numbers = #tpu.dot_dimension_numbers<[1], [0], [0], [1], [0, 0, 1, 1], [], []>} : vector<8x32xbf16>, vector<32x128xbf16>, vector<8x128xf32> -> vector<8x128xf32>
    %c0_60 = arith.constant 0 : index
    %c0_61 = arith.constant 0 : index
    %152 = vector.load %arg10[%c0_60, %c0_61] : memref<1x128xf32, #tpu.memory_space<vmem>>, vector<1x128xf32>
    %153 = vector.broadcast %152 : vector<1x128xf32> to vector<8x128xf32>
    %154 = arith.addf %151, %153 : vector<8x128xf32>
    %cst_62 = arith.constant 5.000000e-01 : f32
    %155 = vector.broadcast %cst_62 : f32 to vector<8x128xf32>
    %156 = arith.mulf %155, %154 : vector<8x128xf32>
    %cst_63 = arith.constant 4.471500e-02 : f32
    %157 = vector.broadcast %cst_63 : f32 to vector<8x128xf32>
    %158 = arith.mulf %157, %154 : vector<8x128xf32>
    %159 = arith.mulf %158, %154 : vector<8x128xf32>
    %160 = arith.mulf %159, %154 : vector<8x128xf32>
    %161 = arith.addf %154, %160 : vector<8x128xf32>
    %cst_64 = arith.constant 0.797884583 : f32
    %162 = vector.broadcast %cst_64 : f32 to vector<8x128xf32>
    %163 = arith.mulf %162, %161 : vector<8x128xf32>
    %164 = math.tanh %163 : vector<8x128xf32>
    %cst_65 = arith.constant 1.000000e+00 : f32
    %165 = vector.broadcast %cst_65 : f32 to vector<8x128xf32>
    %166 = arith.addf %165, %164 : vector<8x128xf32>
    %167 = arith.mulf %156, %166 : vector<8x128xf32>
    %168 = arith.truncf %167 : vector<8x128xf32> to vector<8x128xbf16>
    %c0_66 = arith.constant 0 : index
    %c0_67 = arith.constant 0 : index
    %169 = vector.load %arg11[%c0_66, %c0_67] : memref<128x32xbf16, #tpu.memory_space<vmem>>, vector<128x32xbf16>
    %cst_68 = arith.constant dense<0.000000e+00> : vector<8x32xf32>
    %170 = tpu.matmul %168, %169, %cst_68 {dimension_numbers = #tpu.dot_dimension_numbers<[1], [0], [0], [1], [0, 0, 1, 1], [], []>} : vector<8x128xbf16>, vector<128x32xbf16>, vector<8x32xf32> -> vector<8x32xf32>
    %c0_69 = arith.constant 0 : index
    %c0_70 = arith.constant 0 : index
    %171 = vector.load %arg12[%c0_69, %c0_70] : memref<1x32xf32, #tpu.memory_space<vmem>>, vector<1x32xf32>
    %172 = vector.broadcast %171 : vector<1x32xf32> to vector<8x32xf32>
    %173 = arith.addf %170, %172 : vector<8x32xf32>
    %174 = arith.addf %173, %124 : vector<8x32xf32>
    %175 = vector.shape_cast %174 : vector<8x32xf32> to vector<1x8x32xf32>
    %c0_71 = arith.constant 0 : index
    %c0_72 = arith.constant 0 : index
    %c0_73 = arith.constant 0 : index
    %176 = vector.load %arg13[%c0_71, %c0_72, %c0_73] : memref<1x8x32xf32, #tpu.memory_space<vmem>>, vector<1x8x32xf32>
    tpu.vector_store %arg13[%c0_71, %c0_72, %c0_73], %175 {strides = array<i32>} : memref<1x8x32xf32, #tpu.memory_space<vmem>>, vector<1x8x32xf32>,
    return
  }
  func.func @transform_0(%arg0: i32) -> (i32, i32, i32) {
    %c0_i32 = arith.constant 0 : i32
    %c0_i32_0 = arith.constant 0 : i32
    %c0_i32_1 = arith.constant 0 : i32
    return %arg0, %c0_i32, %c0_i32_0 : i32, i32, i32
  }
  func.func @transform_1(%arg0: i32) -> (i32, i32) {
    %c0_i32 = arith.constant 0 : i32
    %c0_i32_0 = arith.constant 0 : i32
    %c0_i32_1 = arith.constant 0 : i32
    return %c0_i32, %c0_i32_0 : i32, i32
  }
  func.func @transform_2(%arg0: i32) -> (i32, i32) {
    %c0_i32 = arith.constant 0 : i32
    %c0_i32_0 = arith.constant 0 : i32
    %c0_i32_1 = arith.constant 0 : i32
    return %c0_i32, %c0_i32_0 : i32, i32
  }
  func.func @transform_3(%arg0: i32) -> (i32, i32) {
    %c0_i32 = arith.constant 0 : i32
    %c0_i32_0 = arith.constant 0 : i32
    %c0_i32_1 = arith.constant 0 : i32
    return %c0_i32, %c0_i32_0 : i32, i32
  }
  func.func @transform_4(%arg0: i32) -> (i32, i32) {
    %c0_i32 = arith.constant 0 : i32
    %c0_i32_0 = arith.constant 0 : i32
    %c0_i32_1 = arith.constant 0 : i32
    return %c0_i32, %c0_i32_0 : i32, i32
  }
  func.func @transform_5(%arg0: i32) -> (i32, i32) {
    %c0_i32 = arith.constant 0 : i32
    %c0_i32_0 = arith.constant 0 : i32
    %c0_i32_1 = arith.constant 0 : i32
    return %c0_i32, %c0_i32_0 : i32, i32
  }
  func.func @transform_6(%arg0: i32) -> (i32, i32) {
    %c0_i32 = arith.constant 0 : i32
    %c0_i32_0 = arith.constant 0 : i32
    %c0_i32_1 = arith.constant 0 : i32
    return %c0_i32, %c0_i32_0 : i32, i32
  }
  func.func @transform_7(%arg0: i32) -> (i32, i32) {
    %c0_i32 = arith.constant 0 : i32
    %c0_i32_0 = arith.constant 0 : i32
    %c0_i32_1 = arith.constant 0 : i32
    return %c0_i32, %c0_i32_0 : i32, i32
  }
  func.func @transform_8(%arg0: i32) -> (i32, i32) {
    %c0_i32 = arith.constant 0 : i32
    %c0_i32_0 = arith.constant 0 : i32
    %c0_i32_1 = arith.constant 0 : i32
    return %c0_i32, %c0_i32_0 : i32, i32
  }
  func.func @transform_9(%arg0: i32) -> (i32, i32) {
    %c0_i32 = arith.constant 0 : i32
    %c0_i32_0 = arith.constant 0 : i32
    %c0_i32_1 = arith.constant 0 : i32
    return %c0_i32, %c0_i32_0 : i32, i32
  }
  func.func @transform_10(%arg0: i32) -> (i32, i32) {
    %c0_i32 = arith.constant 0 : i32
    %c0_i32_0 = arith.constant 0 : i32
    %c0_i32_1 = arith.constant 0 : i32
    return %c0_i32, %c0_i32_0 : i32, i32
  }
  func.func @transform_11(%arg0: i32) -> (i32, i32) {
    %c0_i32 = arith.constant 0 : i32
    %c0_i32_0 = arith.constant 0 : i32
    %c0_i32_1 = arith.constant 0 : i32
    return %c0_i32, %c0_i32_0 : i32, i32
  }
  func.func @transform_12(%arg0: i32) -> (i32, i32, i32) {
    %c0_i32 = arith.constant 0 : i32
    %c0_i32_0 = arith.constant 0 : i32
    %c0_i32_1 = arith.constant 0 : i32
    return %arg0, %c0_i32, %c0_i32_0 : i32, i32, i32
  }
}

</mosaic_0001>

<llo_original>
// kernel: tpu_custom_call.1
$region0: #{tpu_custom_call.1}
  #allocation0 [shape = 'u32[]', space=smem, size = 0x4, offset = 0x4, fixed_abs, tag = 'smem constant byte address 0x4 - core index']
  #allocation1 [shape = 'u32[144,128]{1,0:T(1,128)}', space=vmem, size = 0x12000, scoped, tag = 'internal scratch']
  #allocation2 [shape = 'bf16[1,8,32]{2,1,0:T(8,128)(2,1)}', space=vmem, size = 0x800, scoped, tag = 'scratch operand']
  %s0 = inlined_call_operand.vmem [shape: f32[2,8,32], index: 0, kind: input, shape index: {}]
  %s1 = inlined_call_operand.vmem [shape: f32[1,32], index: 1, kind: input, shape index: {}]
  %s2 = inlined_call_operand.vmem [shape: f32[1,32], index: 2, kind: input, shape index: {}]
  %s3 = inlined_call_operand.vmem [shape: bf16[32,96], index: 3, kind: input, shape index: {}]
  %s4 = inlined_call_operand.vmem [shape: bf16[32,32], index: 4, kind: input, shape index: {}]
  %s5 = inlined_call_operand.vmem [shape: f32[1,32], index: 5, kind: input, shape index: {}]
  %s6 = inlined_call_operand.vmem [shape: f32[1,32], index: 6, kind: input, shape index: {}]
  %s7 = inlined_call_operand.vmem [shape: f32[1,32], index: 7, kind: input, shape index: {}]
  %s8 = inlined_call_operand.vmem [shape: bf16[32,128], index: 8, kind: input, shape index: {}]
  %s9 = inlined_call_operand.vmem [shape: f32[1,128], index: 9, kind: input, shape index: {}]
  %s10 = inlined_call_operand.vmem [shape: bf16[128,32], index: 10, kind: input, shape index: {}]
  %s11 = inlined_call_operand.vmem [shape: f32[1,32], index: 11, kind: input, shape index: {}]
  %s12 = inlined_call_operand.hbm [shape: f32[2,8,32], index: 12, kind: output, shape index: {}]
  %s13 = sld [smem:[#allocation0]]
  $region81: #{tpu_custom_call.1} parent=0
    _
  %s15 = ssub.s32 1, %s13
  %s16 = scalar_select 0, %s15, %s13
  $region1: #{tpu_custom_call.1} parent=0
    #allocation3 [shape = 'u8[8192]{0}', space=vmem, size = 0x2000, scoped, tag = 'output window, operand 0']
    #allocation4 [shape = 's32[2]{0}', space=sflag, size = 0x8, scoped, tag = 'scoped memory for tpu_custom_call.1']
    %17 = vsyncpa [#allocation4], 0
    %s18 = scalar_lea.sflag [#allocation4], 1
    %19 = vsyncpa %s18, 0
    loop: start=0, step=1, limit=4
    $region2: #{tpu_custom_call.1} parent=1 // loop_pre_header
      _
    $region3: #{tpu_custom_call.1} parent=1 // loop_header
      %s21 = sphi 0, %s25
      %p22 = scmp.ge.s32.totalorder %s21, 4
      %s31 = sphi 0, %s33
      %s34 = sphi 0, %s31
      %s35 = sphi 0, %s34
      %s51 = sphi 0, %s35
      %s55 = sphi 0, %s55
      %s57 = sphi 0, %s55
      %s58 = sphi 0, %s57
      %s72 = sphi 0, %s58
      %s76 = sphi 0, %s76
      %s78 = sphi 0, %s76
      %s79 = sphi 0, %s78
      %s93 = sphi 0, %s79
      %s97 = sphi 0, %s97
      %s99 = sphi 0, %s97
      %s100 = sphi 0, %s99
      %s114 = sphi 0, %s100
      %s118 = sphi 0, %s118
      %s120 = sphi 0, %s118
      %s121 = sphi 0, %s120
      %s135 = sphi 0, %s121
      %s139 = sphi 0, %s139
      %s141 = sphi 0, %s139
      %s142 = sphi 0, %s141
      %s156 = sphi 0, %s142
      %s160 = sphi 0, %s160
      %s162 = sphi 0, %s160
      %s163 = sphi 0, %s162
      %s177 = sphi 0, %s163
      %s181 = sphi 0, %s181
      %s183 = sphi 0, %s181
      %s184 = sphi 0, %s183
      %s198 = sphi 0, %s184
      %s202 = sphi 0, %s202
      %s204 = sphi 0, %s202
      %s205 = sphi 0, %s204
      %s219 = sphi 0, %s205
      %s223 = sphi 0, %s223
      %s225 = sphi 0, %s223
      %s226 = sphi 0, %s225
      %s240 = sphi 0, %s226
      %s244 = sphi 0, %s244
      %s246 = sphi 0, %s244
      %s247 = sphi 0, %s246
      %s261 = sphi 0, %s247
      %s265 = sphi 0, %s265
      %s267 = sphi 0, %s265
      %s268 = sphi 0, %s267
      %s282 = sphi 0, %s268
      %s288 = sphi 0, %s290
      %s291 = sphi 0, %s288
      %s292 = sphi 0, %s291
      %s308 = sphi 0, %s292
    $region4: #{tpu_custom_call.1} parent=1 // loop_header_branch
      %24 = sbr.rel (%p22) target = $region8
    $region5: #{tpu_custom_call.1} parent=1 // loop_body
      %s26 = ssub.s32 %s21, 1
      %s27 = ssub.s32 %s21, 2
      %s28 = sadd.s32 %s21, 1
      %s29 = ssub.s32 %s21, %s28
      %p30 = scmp.eq.s32.totalorder %s29, 0
      %s32 = sadd.s32 %s31, 1
      %s33 = scalar_select %p30, %s31, %s32
      %p36 = pneg %p30
      %p37 = scmp.eq.s32.totalorder %s21, 1
      %p38 = por %p36, %p37
      %p39 = scmp.ne.s32.totalorder %s31, %s34
      %p40 = scmp.eq.s32.totalorder %s21, 0
      %p41 = por %p39, %p40
      %p42 = scmp.ne.s32.totalorder %s31, %s34
      %p43 = scmp.eq.s32.totalorder %s26, 1
      %p44 = por %p42, %p43
      %p45 = scmp.ne.s32.totalorder %s34, %s35
      %p46 = scmp.eq.s32.totalorder %s26, 0
      %p47 = por %p45, %p46
      %p48 = scmp.ne.s32.totalorder %s34, %s35
      %p49 = scmp.eq.s32.totalorder %s27, 1
      %p50 = por %p48, %p49
      %p52 = scmp.ne.s32.totalorder %s35, %s51
      %p53 = scmp.eq.s32.totalorder %s27, 0
      %p54 = por %p52, %p53
      %s56 = sadd.s32 %s55, 1
      %p59 = scmp.eq.s32.totalorder %s21, 1
      %p60 = scmp.ne.s32.totalorder %s55, %s57
      %p61 = scmp.eq.s32.totalorder %s21, 0
      %p62 = por %p60, %p61
      %p63 = scmp.ne.s32.totalorder %s55, %s57
      %p64 = scmp.eq.s32.totalorder %s26, 1
      %p65 = por %p63, %p64
      %p66 = scmp.ne.s32.totalorder %s57, %s58
      %p67 = scmp.eq.s32.totalorder %s26, 0
      %p68 = por %p66, %p67
      %p69 = scmp.ne.s32.totalorder %s57, %s58
      %p70 = scmp.eq.s32.totalorder %s27, 1
      %p71 = por %p69, %p70
      %p73 = scmp.ne.s32.totalorder %s58, %s72
      %p74 = scmp.eq.s32.totalorder %s27, 0
      %p75 = por %p73, %p74
      %s77 = sadd.s32 %s76, 1
      %p80 = scmp.eq.s32.totalorder %s21, 1
      %p81 = scmp.ne.s32.totalorder %s76, %s78
      %p82 = scmp.eq.s32.totalorder %s21, 0
      %p83 = por %p81, %p82
      %p84 = scmp.ne.s32.totalorder %s76, %s78
      %p85 = scmp.eq.s32.totalorder %s26, 1
      %p86 = por %p84, %p85
      %p87 = scmp.ne.s32.totalorder %s78, %s79
      %p88 = scmp.eq.s32.totalorder %s26, 0
      %p89 = por %p87, %p88
      %p90 = scmp.ne.s32.totalorder %s78, %s79
      %p91 = scmp.eq.s32.totalorder %s27, 1
      %p92 = por %p90, %p91
      %p94 = scmp.ne.s32.totalorder %s79, %s93
      %p95 = scmp.eq.s32.totalorder %s27, 0
      %p96 = por %p94, %p95
      %s98 = sadd.s32 %s97, 1
      %p101 = scmp.eq.s32.totalorder %s21, 1
      %p102 = scmp.ne.s32.totalorder %s97, %s99
      %p103 = scmp.eq.s32.totalorder %s21, 0
      %p104 = por %p102, %p103
      %p105 = scmp.ne.s32.totalorder %s97, %s99
      %p106 = scmp.eq.s32.totalorder %s26, 1
      %p107 = por %p105, %p106
      %p108 = scmp.ne.s32.totalorder %s99, %s100
      %p109 = scmp.eq.s32.totalorder %s26, 0
      %p110 = por %p108, %p109
      %p111 = scmp.ne.s32.totalorder %s99, %s100
      %p112 = scmp.eq.s32.totalorder %s27, 1
      %p113 = por %p111, %p112
      %p115 = scmp.ne.s32.totalorder %s100, %s114
      %p116 = scmp.eq.s32.totalorder %s27, 0
      %p117 = por %p115, %p116
      %s119 = sadd.s32 %s118, 1
      %p122 = scmp.eq.s32.totalorder %s21, 1
      %p123 = scmp.ne.s32.totalorder %s118, %s120
      %p124 = scmp.eq.s32.totalorder %s21, 0
      %p125 = por %p123, %p124
      %p126 = scmp.ne.s32.totalorder %s118, %s120
      %p127 = scmp.eq.s32.totalorder %s26, 1
      %p128 = por %p126, %p127
      %p129 = scmp.ne.s32.totalorder %s120, %s121
      %p130 = scmp.eq.s32.totalorder %s26, 0
      %p131 = por %p129, %p130
      %p132 = scmp.ne.s32.totalorder %s120, %s121
      %p133 = scmp.eq.s32.totalorder %s27, 1
      %p134 = por %p132, %p133
      %p136 = scmp.ne.s32.totalorder %s121, %s135
      %p137 = scmp.eq.s32.totalorder %s27, 0
      %p138 = por %p136, %p137
      %s140 = sadd.s32 %s139, 1
      %p143 = scmp.eq.s32.totalorder %s21, 1
      %p144 = scmp.ne.s32.totalorder %s139, %s141
      %p145 = scmp.eq.s32.totalorder %s21, 0
      %p146 = por %p144, %p145
      %p147 = scmp.ne.s32.totalorder %s139, %s141
      %p148 = scmp.eq.s32.totalorder %s26, 1
      %p149 = por %p147, %p148
      %p150 = scmp.ne.s32.totalorder %s141, %s142
      %p151 = scmp.eq.s32.totalorder %s26, 0
      %p152 = por %p150, %p151
      %p153 = scmp.ne.s32.totalorder %s141, %s142
      %p154 = scmp.eq.s32.totalorder %s27, 1
      %p155 = por %p153, %p154
      %p157 = scmp.ne.s32.totalorder %s142, %s156
      %p158 = scmp.eq.s32.totalorder %s27, 0
      %p159 = por %p157, %p158
      %s161 = sadd.s32 %s160, 1
      %p164 = scmp.eq.s32.totalorder %s21, 1
      %p165 = scmp.ne.s32.totalorder %s160, %s162
      %p166 = scmp.eq.s32.totalorder %s21, 0
      %p167 = por %p165, %p166
      %p168 = scmp.ne.s32.totalorder %s160, %s162
      %p169 = scmp.eq.s32.totalorder %s26, 1
      %p170 = por %p168, %p169
      %p171 = scmp.ne.s32.totalorder %s162, %s163
      %p172 = scmp.eq.s32.totalorder %s26, 0
      %p173 = por %p171, %p172
      %p174 = scmp.ne.s32.totalorder %s162, %s163
      %p175 = scmp.eq.s32.totalorder %s27, 1
      %p176 = por %p174, %p175
      %p178 = scmp.ne.s32.totalorder %s163, %s177
      %p179 = scmp.eq.s32.totalorder %s27, 0
      %p180 = por %p178, %p179
      %s182 = sadd.s32 %s181, 1
      %p185 = scmp.eq.s32.totalorder %s21, 1
      %p186 = scmp.ne.s32.totalorder %s181, %s183
      %p187 = scmp.eq.s32.totalorder %s21, 0
      %p188 = por %p186, %p187
      %p189 = scmp.ne.s32.totalorder %s181, %s183
      %p190 = scmp.eq.s32.totalorder %s26, 1
      %p191 = por %p189, %p190
      %p192 = scmp.ne.s32.totalorder %s183, %s184
      %p193 = scmp.eq.s32.totalorder %s26, 0
      %p194 = por %p192, %p193
      %p195 = scmp.ne.s32.totalorder %s183, %s184
      %p196 = scmp.eq.s32.totalorder %s27, 1
      %p197 = por %p195, %p196
      %p199 = scmp.ne.s32.totalorder %s184, %s198
      %p200 = scmp.eq.s32.totalorder %s27, 0
      %p201 = por %p199, %p200
      %s203 = sadd.s32 %s202, 1
      %p206 = scmp.eq.s32.totalorder %s21, 1
      %p207 = scmp.ne.s32.totalorder %s202, %s204
      %p208 = scmp.eq.s32.totalorder %s21, 0
      %p209 = por %p207, %p208
      %p210 = scmp.ne.s32.totalorder %s202, %s204
      %p211 = scmp.eq.s32.totalorder %s26, 1
      %p212 = por %p210, %p211
      %p213 = scmp.ne.s32.totalorder %s204, %s205
      %p214 = scmp.eq.s32.totalorder %s26, 0
      %p215 = por %p213, %p214
      %p216 = scmp.ne.s32.totalorder %s204, %s205
      %p217 = scmp.eq.s32.totalorder %s27, 1
      %p218 = por %p216, %p217
      %p220 = scmp.ne.s32.totalorder %s205, %s219
      %p221 = scmp.eq.s32.totalorder %s27, 0
      %p222 = por %p220, %p221
      %s224 = sadd.s32 %s223, 1
      %p227 = scmp.eq.s32.totalorder %s21, 1
      %p228 = scmp.ne.s32.totalorder %s223, %s225
      %p229 = scmp.eq.s32.totalorder %s21, 0
      %p230 = por %p228, %p229
      %p231 = scmp.ne.s32.totalorder %s223, %s225
      %p232 = scmp.eq.s32.totalorder %s26, 1
      %p233 = por %p231, %p232
      %p234 = scmp.ne.s32.totalorder %s225, %s226
      %p235 = scmp.eq.s32.totalorder %s26, 0
      %p236 = por %p234, %p235
      %p237 = scmp.ne.s32.totalorder %s225, %s226
      %p238 = scmp.eq.s32.totalorder %s27, 1
      %p239 = por %p237, %p238
      %p241 = scmp.ne.s32.totalorder %s226, %s240
      %p242 = scmp.eq.s32.totalorder %s27, 0
      %p243 = por %p241, %p242
      %s245 = sadd.s32 %s244, 1
      %p248 = scmp.eq.s32.totalorder %s21, 1
      %p249 = scmp.ne.s32.totalorder %s244, %s246
      %p250 = scmp.eq.s32.totalorder %s21, 0
      %p251 = por %p249, %p250
      %p252 = scmp.ne.s32.totalorder %s244, %s246
      %p253 = scmp.eq.s32.totalorder %s26, 1
      %p254 = por %p252, %p253
      %p255 = scmp.ne.s32.totalorder %s246, %s247
      %p256 = scmp.eq.s32.totalorder %s26, 0
      %p257 = por %p255, %p256
      %p258 = scmp.ne.s32.totalorder %s246, %s247
      %p259 = scmp.eq.s32.totalorder %s27, 1
      %p260 = por %p258, %p259
      %p262 = scmp.ne.s32.totalorder %s247, %s261
      %p263 = scmp.eq.s32.totalorder %s27, 0
      %p264 = por %p262, %p263
      %s266 = sadd.s32 %s265, 1
      %p269 = scmp.eq.s32.totalorder %s21, 1
      %p270 = scmp.ne.s32.totalorder %s265, %s267
      %p271 = scmp.eq.s32.totalorder %s21, 0
      %p272 = por %p270, %p271
      %p273 = scmp.ne.s32.totalorder %s265, %s267
      %p274 = scmp.eq.s32.totalorder %s26, 1
      %p275 = por %p273, %p274
      %p276 = scmp.ne.s32.totalorder %s267, %s268
      %p277 = scmp.eq.s32.totalorder %s26, 0
      %p278 = por %p276, %p277
      %p279 = scmp.ne.s32.totalorder %s267, %s268
      %p280 = scmp.eq.s32.totalorder %s27, 1
      %p281 = por %p279, %p280
      %p283 = scmp.ne.s32.totalorder %s268, %s282
      %p284 = scmp.eq.s32.totalorder %s27, 0
      %p285 = por %p283, %p284
      %s286 = ssub.s32 %s21, %s28
      %p287 = scmp.eq.s32.totalorder %s286, 0
      %s289 = sadd.s32 %s288, 1
      %s290 = scalar_select %p287, %s288, %s289
      %p293 = pneg %p287
      %p294 = scmp.eq.s32.totalorder %s21, 1
      %p295 = por %p293, %p294
      %p296 = scmp.ne.s32.totalorder %s288, %s291
      %p297 = scmp.eq.s32.totalorder %s21, 0
      %p298 = por %p296, %p297
      %p299 = scmp.ne.s32.totalorder %s288, %s291
      %p300 = scmp.eq.s32.totalorder %s26, 1
      %p301 = por %p299, %p300
      %p302 = scmp.ne.s32.totalorder %s291, %s292
      %p303 = scmp.eq.s32.totalorder %s26, 0
      %p304 = por %p302, %p303
      %p305 = scmp.ne.s32.totalorder %s291, %s292
      %p306 = scmp.eq.s32.totalorder %s27, 1
      %p307 = por %p305, %p306
      %p309 = scmp.ne.s32.totalorder %s292, %s308
      %p310 = scmp.eq.s32.totalorder %s27, 0
      %p311 = por %p309, %p310
      %p312 = scmp.le.s32.totalorder 1, %s21
      %p313 = scmp.lt.s32.totalorder %s21, 3
      %p314 = pnand %p312, %p313
      %p315 = pneg %p314
      // Predicated region
      $region9: #{tpu_custom_call.1} parent=5 // pred_check
        _
      $region10: #{tpu_custom_call.1} parent=5 // pred_check_branch
        %317 = sbr.rel (%p314) target = $region12
      $region11: #{tpu_custom_call.1} parent=5 // pred_region
        %s318 = ssub.s32 %s21, 1
        // Predicated region
        $region13: #{tpu_custom_call.1} parent=11 // pred_check
          %p319 = pneg %p68
        $region14: #{tpu_custom_call.1} parent=11 // pred_check_branch
          %321 = sbr.rel (%p319) target = $region16
        $region15: #{tpu_custom_call.1} parent=11 // pred_region
          _
        $region16: #{tpu_custom_call.1} parent=11 // pred_fallthru
          _
        // Predicated region
        $region17: #{tpu_custom_call.1} parent=11 // pred_check
          %p322 = pneg %p89
        $region18: #{tpu_custom_call.1} parent=11 // pred_check_branch
          %324 = sbr.rel (%p322) target = $region20
        $region19: #{tpu_custom_call.1} parent=11 // pred_region
          _
        $region20: #{tpu_custom_call.1} parent=11 // pred_fallthru
          _
        // Predicated region
        $region21: #{tpu_custom_call.1} parent=11 // pred_check
          %p325 = pneg %p110
        $region22: #{tpu_custom_call.1} parent=11 // pred_check_branch
          %327 = sbr.rel (%p325) target = $region24
        $region23: #{tpu_custom_call.1} parent=11 // pred_region
          _
        $region24: #{tpu_custom_call.1} parent=11 // pred_fallthru
          _
        // Predicated region
        $region25: #{tpu_custom_call.1} parent=11 // pred_check
          %p328 = pneg %p131
        $region26: #{tpu_custom_call.1} parent=11 // pred_check_branch
          %330 = sbr.rel (%p328) target = $region28
        $region27: #{tpu_custom_call.1} parent=11 // pred_region
          _
        $region28: #{tpu_custom_call.1} parent=11 // pred_fallthru
          _
        // Predicated region
        $region29: #{tpu_custom_call.1} parent=11 // pred_check
          %p331 = pneg %p152
        $region30: #{tpu_custom_call.1} parent=11 // pred_check_branch
          %333 = sbr.rel (%p331) target = $region32
        $region31: #{tpu_custom_call.1} parent=11 // pred_region
          _
        $region32: #{tpu_custom_call.1} parent=11 // pred_fallthru
          _
        // Predicated region
        $region33: #{tpu_custom_call.1} parent=11 // pred_check
          %p334 = pneg %p173
        $region34: #{tpu_custom_call.1} parent=11 // pred_check_branch
          %336 = sbr.rel (%p334) target = $region36
        $region35: #{tpu_custom_call.1} parent=11 // pred_region
          _
        $region36: #{tpu_custom_call.1} parent=11 // pred_fallthru
          _
        // Predicated region
        $region37: #{tpu_custom_call.1} parent=11 // pred_check
          %p337 = pneg %p194
        $region38: #{tpu_custom_call.1} parent=11 // pred_check_branch
          %339 = sbr.rel (%p337) target = $region40
        $region39: #{tpu_custom_call.1} parent=11 // pred_region
          _
        $region40: #{tpu_custom_call.1} parent=11 // pred_fallthru
          _
        // Predicated region
        $region41: #{tpu_custom_call.1} parent=11 // pred_check
          %p340 = pneg %p215
        $region42: #{tpu_custom_call.1} parent=11 // pred_check_branch
          %342 = sbr.rel (%p340) target = $region44
        $region43: #{tpu_custom_call.1} parent=11 // pred_region
          _
        $region44: #{tpu_custom_call.1} parent=11 // pred_fallthru
          _
        // Predicated region
        $region45: #{tpu_custom_call.1} parent=11 // pred_check
          %p343 = pneg %p236
        $region46: #{tpu_custom_call.1} parent=11 // pred_check_branch
          %345 = sbr.rel (%p343) target = $region48
        $region47: #{tpu_custom_call.1} parent=11 // pred_region
          _
        $region48: #{tpu_custom_call.1} parent=11 // pred_fallthru
          _
        // Predicated region
        $region49: #{tpu_custom_call.1} parent=11 // pred_check
          %p346 = pneg %p257
        $region50: #{tpu_custom_call.1} parent=11 // pred_check_branch
          %348 = sbr.rel (%p346) target = $region52
        $region51: #{tpu_custom_call.1} parent=11 // pred_region
          _
        $region52: #{tpu_custom_call.1} parent=11 // pred_fallthru
          _
        // Predicated region
        $region53: #{tpu_custom_call.1} parent=11 // pred_check
          %p349 = pneg %p278
        $region54: #{tpu_custom_call.1} parent=11 // pred_check_branch
          %351 = sbr.rel (%p349) target = $region56
        $region55: #{tpu_custom_call.1} parent=11 // pred_region
          _
        $region56: #{tpu_custom_call.1} parent=11 // pred_fallthru
          _
      $region12: #{tpu_custom_call.1} parent=5 // pred_fallthru
        _
      %p352 = scmp.lt.s32.totalorder %s21, 2
      // Predicated region
      $region57: #{tpu_custom_call.1} parent=5 // pred_check
        %p353 = pneg %p352
      $region58: #{tpu_custom_call.1} parent=5 // pred_check_branch
        %355 = sbr.rel (%p353) target = $region60
      $region59: #{tpu_custom_call.1} parent=5 // pred_region
        // Predicated region
        $region61: #{tpu_custom_call.1} parent=59 // pred_check
          %p356 = pneg %p41
        $region62: #{tpu_custom_call.1} parent=59 // pred_check_branch
          %358 = sbr.rel (%p356) target = $region64
        $region63: #{tpu_custom_call.1} parent=59 // pred_region
          %p359 = scmp.lt.s32.totalorder %s21, 1
          %s360 = scalar_select %p359, %s21, 1
          %s361 = smul.addr %s360, 8
          %s362 = scalar_lea.vmem %s0, %s361
        $region64: #{tpu_custom_call.1} parent=59 // pred_fallthru
          _
      $region60: #{tpu_custom_call.1} parent=5 // pred_fallthru
        _
      %p363 = scmp.le.s32.totalorder 1, %s21
      %p364 = scmp.lt.s32.totalorder %s21, 3
      %p365 = pnand %p363, %p364
      %p366 = pneg %p365
      // Predicated region
      $region65: #{tpu_custom_call.1} parent=5 // pred_check
        _
      $region66: #{tpu_custom_call.1} parent=5 // pred_check_branch
        %368 = sbr.rel (%p365) target = $region68
      $region67: #{tpu_custom_call.1} parent=5 // pred_region
        %s369 = ssub.s32 %s21, 1
        %p370 = scmp.lt.s32.totalorder %s26, 1
        %s371 = scalar_select %p370, %s26, 1
        %s372 = smul.addr %s371, 8
        %s373 = scalar_lea.vmem %s0, %s372
        %p374 = pneg %p47
        %p375 = pneg %p44
        %p376 = pneg %p68
        %p377 = pneg %p65
        %p378 = pneg %p89
        %p379 = pneg %p86
        %p380 = pneg %p110
        %p381 = pneg %p107
        %p382 = pneg %p131
        %p383 = pneg %p128
        %p384 = pneg %p152
        %p385 = pneg %p149
        %p386 = pneg %p173
        %p387 = pneg %p170
        %p388 = pneg %p194
        %p389 = pneg %p191
        %p390 = pneg %p215
        %p391 = pneg %p212
        %p392 = pneg %p236
        %p393 = pneg %p233
        %p394 = pneg %p257
        %p395 = pneg %p254
        %p396 = pneg %p278
        %p397 = pneg %p275
        %p398 = pneg %p304
        %p399 = pneg %p301
        %s400 = sand.u32 %s291, 1
        %s401 = scalar_lea.sflag [#allocation4], %s400
        %s402 = sand.u32 %s291, 1
        %s403 = smul.addr %s402, 8
        %s404 = scalar_lea.vmem [#allocation3], %s403
        %p405 = scmp.lt.s32.totalorder %s26, 1
        %s406 = scalar_select %p405, %s26, 1
        %s407 = smul.addr %s406, 8
        %s408 = scalar_lea.vmem %s0, %s407
        %v410 = vld [vmem:[%s408] sm:$0xff]
        %v411 = vld [vmem:[%s1] sm:$0x1]
        %v412 = vld [vmem:[%s2] sm:$0x1]
        %vm413 = vcmask 261120
        %v414 = vsel %vm413, %v410, 0.0
        %415 = vadd.xlane.f32.xlu0 %v414
        %v416 = vpop.xlane.xlu0 %415
        %v417 = vrcp.pop 32.0
        %v418 = vmul.f32 %v416, %v417
        %v419 = vsub.f32 %v410, %v418
        %v420 = vmul.f32 %v419, %v419
        %v421 = vsel %vm413, %v420, 0.0
        %422 = vadd.xlane.f32.xlu0 %v421
        %v423 = vpop.xlane.xlu0 %422
        %v424 = vmul.f32 %v423, %v417
        %v425 = vadd.f32 %v424, 1e-05
        %v426 = vrsqrt.pop %v425
        %v427 = vmul.f32 %v419, %v426
        %v429 = vlaneseq
        %v430 = vshrl.u32 %v429, 7
        %v431 = vsub.s32 0, %v430
        %v432 = vrot.slane %v411, %v431
        %v434 = vmul.f32 %v427, %v432
        %v436 = vlaneseq
        %v437 = vshrl.u32 %v436, 7
        %v438 = vsub.s32 0, %v437
        %v439 = vrot.slane %v412, %v438
        %v441 = vadd.f32 %v434, %v439
        %v442 = vpack.c.bf16 %v441, %v441
        %v443 = vld [vmem:[%s3] sm:$0xf]
        %v444 = vld [vmem:[%s3 + $0x4] sm:$0xf]
        %v445 = vld [vmem:[%s3 + $0x8] sm:$0xf]
        %v446 = vld [vmem:[%s3 + $0xc] sm:$0xf]
        %v451 = vunpack.c.l.b16 %v443
        %v452 = vunpack.c.l.b16 %v444
        %v453 = vunpack.c.l.b16 %v445
        %v454 = vunpack.c.l.b16 %v446
        %v455 = vpack.c.b16 %v452, %v451
        %v456 = vpack.c.b16 %v454, %v453
        %v460 = vsel %vm413, %v442, 0
        %462 = vmatprep.subr.bf16.mxu0 0
        %463 = vmatpush1.bf16.msra.mxu0 0
        %464 = vmatprep.subr.bf16.mxu0 0
        %465 = vmatpush1.bf16.msra.mxu0 0
        %466 = vmatprep.subr.bf16.mxu0 0
        %467 = vmatpush1.bf16.msra.mxu0 0
        %468 = vmatprep.subr.bf16.mxu0 0
        %469 = vmatpush1.bf16.msra.mxu0 0
        %470 = vmatprep.subr.bf16.mxu0 0
        %471 = vmatpush1.bf16.msra.mxu0 0
        %472 = vmatprep.subr.bf16.mxu0 0
        %473 = vmatpush1.bf16.msra.mxu0 0
        %474 = vmatprep.subr.bf16.mxu0 0
        %475 = vmatpush1.bf16.msra.mxu0 %v456
        %476 = vmatprep.subr.bf16.mxu0 0
        %477 = vmatpush1.bf16.msra.mxu0 %v455
        %478 = vmatprep.subr.bf16.mxu0 0
        %479 = vmatpush2.bf16.msra.mxu0 0
        %480 = vmatprep.subr.bf16.mxu0 0
        %481 = vmatpush2.bf16.msra.mxu0 0
        %482 = vmatprep.subr.bf16.mxu0 0
        %483 = vmatpush2.bf16.msra.mxu0 0
        %484 = vmatprep.subr.bf16.mxu0 0
        %485 = vmatpush2.bf16.msra.mxu0 0
        %486 = vmatprep.subr.bf16.mxu0 0
        %487 = vmatpush2.bf16.msra.mxu0 0
        %488 = vmatprep.subr.bf16.mxu0 0
        %489 = vmatpush2.bf16.msra.mxu0 0
        %490 = vmatprep.subr.bf16.mxu0 0
        %491 = vmatpush2.bf16.msra.mxu0 0
        %492 = vmatprep.subr.bf16.mxu0 0
        %493 = vmatpush2.bf16.msra.mxu0 0
        %494 = vmatprep.mubr.bf16.mxu0 0
        %495 = vmatmul.mubr.bf16.gmra.mxu0 %v460
        %v496 = vpop.f32.mrf.mxu0
        %v497 = vadd.f32 0.0, %v496
        %v498 = vpop.f32.mrf.mxu0
        %v499 = vpop.f32.mrf.mxu0
        %v500 = vpop.f32.mrf.mxu0
        %501 = vdwg.mxu0
        %v502 = vpack.c.bf16 %v497, %v497
        %v503 = vlaneseq
        %v504 = vshrl.u32 %v503, 7
        %v505 = vlaneseq
        %v506 = vand.u32 %v505, 127
        %vm507 = vcmp.gt.s32.totalorder %v506, %v504
        %v508 = vsel %vm507, -1e+30, 0.0
        %510 = vrot.lane.b32.xlu0 %v502, 96
        %v511 = vpop.permute.xlu0 %510
        %vm512 = vcmask 64512
        %v514 = vsel %vm512, %v502, 0
        %v517 = vsel %vm512, %v511, 0
        %519 = vmatprep.subr.bf16.mxu0 0
        %520 = vmatpush1.bf16.xpose.msra.mxu0 0
        %521 = vmatprep.subr.bf16.mxu0 0
        %522 = vmatpush1.bf16.xpose.msra.mxu0 0
        %523 = vmatprep.subr.bf16.mxu0 0
        %524 = vmatpush1.bf16.xpose.msra.mxu0 0
        %525 = vmatprep.subr.bf16.mxu0 0
        %526 = vmatpush1.bf16.xpose.msra.mxu0 0
        %527 = vmatprep.subr.bf16.mxu0 0
        %528 = vmatpush1.bf16.xpose.msra.mxu0 0
        %529 = vmatprep.subr.bf16.mxu0 0
        %530 = vmatpush1.bf16.xpose.msra.mxu0 0
        %531 = vmatprep.subr.bf16.mxu0 0
        %532 = vmatpush1.bf16.xpose.msra.mxu0 0
        %533 = vmatprep.subr.bf16.mxu0 0
        %534 = vmatpush1.bf16.xpose.msra.mxu0 %v517
        %535 = vmatprep.subr.bf16.mxu0 0
        %536 = vmatpush2.bf16.xpose.msra.mxu0 0
        %537 = vmatprep.subr.bf16.mxu0 0
        %538 = vmatpush2.bf16.xpose.msra.mxu0 0
        %539 = vmatprep.subr.bf16.mxu0 0
        %540 = vmatpush2.bf16.xpose.msra.mxu0 0
        %541 = vmatprep.subr.bf16.mxu0 0
        %542 = vmatpush2.bf16.xpose.msra.mxu0 0
        %543 = vmatprep.subr.bf16.mxu0 0
        %544 = vmatpush2.bf16.xpose.msra.mxu0 0
        %545 = vmatprep.subr.bf16.mxu0 0
        %546 = vmatpush2.bf16.xpose.msra.mxu0 0
        %547 = vmatprep.subr.bf16.mxu0 0
        %548 = vmatpush2.bf16.xpose.msra.mxu0 0
        %549 = vmatprep.subr.bf16.mxu0 0
        %550 = vmatpush2.bf16.xpose.msra.mxu0 0
        %551 = vmatprep.mubr.bf16.mxu0 0
        %552 = vmatmul.mubr.bf16.gmra.mxu0 %v514
        %v553 = vpop.f32.mrf.mxu0
        %v554 = vadd.f32 %v508, %v553
        %v555 = vpop.f32.mrf.mxu0
        %v556 = vpop.f32.mrf.mxu0
        %v557 = vpop.f32.mrf.mxu0
        %558 = vdwg.mxu0
        %v559 = vsel %vm512, %v554, -inf
        %560 = vmax.xlane.f32.xlu0 %v559
        %v561 = vpop.xlane.xlu0 %560
        %v562 = vsub.f32 %v554, %v561
        %v563 = vmul.f32 %v562, 1.442695
        %v564 = vpow.pop %v563
        %v565 = vsel %vm512, %v564, 0.0
        %566 = vadd.xlane.f32.xlu0 %v565
        %v567 = vpop.xlane.xlu0 %566
        %v568 = vrcp.pop %v567
        %v569 = vmul.f32 %v564, %v568
        %v570 = vpack.c.bf16 %v569, %v569
        %571 = vrot.lane.b32.xlu0 %v502, 64
        %v572 = vpop.permute.xlu0 %571
        %v574 = vsel %vm512, %v570, 0
        %vm576 = vcmask 1043456
        %v578 = vsel %vm576, %v572, 0
        %580 = vmatprep.subr.bf16.mxu0 0
        %581 = vmatpush1.bf16.msra.mxu0 0
        %582 = vmatprep.subr.bf16.mxu0 0
        %583 = vmatpush1.bf16.msra.mxu0 0
        %584 = vmatprep.subr.bf16.mxu0 0
        %585 = vmatpush1.bf16.msra.mxu0 0
        %586 = vmatprep.subr.bf16.mxu0 0
        %587 = vmatpush1.bf16.msra.mxu0 0
        %588 = vmatprep.subr.bf16.mxu0 0
        %589 = vmatpush1.bf16.msra.mxu0 0
        %590 = vmatprep.subr.bf16.mxu0 0
        %591 = vmatpush1.bf16.msra.mxu0 0
        %592 = vmatprep.subr.bf16.mxu0 0
        %593 = vmatpush1.bf16.msra.mxu0 0
        %594 = vmatprep.subr.bf16.mxu0 0
        %595 = vmatpush1.bf16.msra.mxu0 %v578
        %596 = vmatprep.subr.bf16.mxu0 0
        %597 = vmatpush2.bf16.msra.mxu0 0
        %598 = vmatprep.subr.bf16.mxu0 0
        %599 = vmatpush2.bf16.msra.mxu0 0
        %600 = vmatprep.subr.bf16.mxu0 0
        %601 = vmatpush2.bf16.msra.mxu0 0
        %602 = vmatprep.subr.bf16.mxu0 0
        %603 = vmatpush2.bf16.msra.mxu0 0
        %604 = vmatprep.subr.bf16.mxu0 0
        %605 = vmatpush2.bf16.msra.mxu0 0
        %606 = vmatprep.subr.bf16.mxu0 0
        %607 = vmatpush2.bf16.msra.mxu0 0
        %608 = vmatprep.subr.bf16.mxu0 0
        %609 = vmatpush2.bf16.msra.mxu0 0
        %610 = vmatprep.subr.bf16.mxu0 0
        %611 = vmatpush2.bf16.msra.mxu0 0
        %612 = vmatprep.mubr.bf16.mxu0 0
        %613 = vmatmul.mubr.bf16.gmra.mxu0 %v574
        %v614 = vpop.f32.mrf.mxu0
        %v615 = vadd.f32 0.0, %v614
        %v616 = vpop.f32.mrf.mxu0
        %v617 = vpop.f32.mrf.mxu0
        %v618 = vpop.f32.mrf.mxu0
        %619 = vdwg.mxu0
        %v620 = vpack.c.bf16 %v615, %v615
        %vm621 = vcmask 60416
        %622 = vst.msk [vmem:[#allocation2] sm:$0xf] %vm621, %v620
        %623 = vrot.lane.b32.xlu0 %v502, 120
        %v624 = vpop.permute.xlu0 %623
        %625 = vrot.lane.b32.xlu0 %v502, 88
        %v626 = vpop.permute.xlu0 %625
        %v628 = vsel %vm512, %v624, 0
        %v631 = vsel %vm512, %v626, 0
        %633 = vmatprep.subr.bf16.mxu0 0
        %634 = vmatpush1.bf16.xpose.msra.mxu0 0
        %635 = vmatprep.subr.bf16.mxu0 0
        %636 = vmatpush1.bf16.xpose.msra.mxu0 0
        %637 = vmatprep.subr.bf16.mxu0 0
        %638 = vmatpush1.bf16.xpose.msra.mxu0 0
        %639 = vmatprep.subr.bf16.mxu0 0
        %640 = vmatpush1.bf16.xpose.msra.mxu0 0
        %641 = vmatprep.subr.bf16.mxu0 0
        %642 = vmatpush1.bf16.xpose.msra.mxu0 0
        %643 = vmatprep.subr.bf16.mxu0 0
        %644 = vmatpush1.bf16.xpose.msra.mxu0 0
        %645 = vmatprep.subr.bf16.mxu0 0
        %646 = vmatpush1.bf16.xpose.msra.mxu0 0
        %647 = vmatprep.subr.bf16.mxu0 0
        %648 = vmatpush1.bf16.xpose.msra.mxu0 %v631
        %649 = vmatprep.subr.bf16.mxu0 0
        %650 = vmatpush2.bf16.xpose.msra.mxu0 0
        %651 = vmatprep.subr.bf16.mxu0 0
        %652 = vmatpush2.bf16.xpose.msra.mxu0 0
        %653 = vmatprep.subr.bf16.mxu0 0
        %654 = vmatpush2.bf16.xpose.msra.mxu0 0
        %655 = vmatprep.subr.bf16.mxu0 0
        %656 = vmatpush2.bf16.xpose.msra.mxu0 0
        %657 = vmatprep.subr.bf16.mxu0 0
        %658 = vmatpush2.bf16.xpose.msra.mxu0 0
        %659 = vmatprep.subr.bf16.mxu0 0
        %660 = vmatpush2.bf16.xpose.msra.mxu0 0
        %661 = vmatprep.subr.bf16.mxu0 0
        %662 = vmatpush2.bf16.xpose.msra.mxu0 0
        %663 = vmatprep.subr.bf16.mxu0 0
        %664 = vmatpush2.bf16.xpose.msra.mxu0 0
        %665 = vmatprep.mubr.bf16.mxu0 0
        %666 = vmatmul.mubr.bf16.gmra.mxu0 %v628
        %v667 = vpop.f32.mrf.mxu0
        %v668 = vadd.f32 %v508, %v667
        %v669 = vpop.f32.mrf.mxu0
        %v670 = vpop.f32.mrf.mxu0
        %v671 = vpop.f32.mrf.mxu0
        %672 = vdwg.mxu0
        %v673 = vsel %vm512, %v668, -inf
        %674 = vmax.xlane.f32.xlu0 %v673
        %v675 = vpop.xlane.xlu0 %674
        %v676 = vsub.f32 %v668, %v675
        %v677 = vmul.f32 %v676, 1.442695
        %v678 = vpow.pop %v677
        %v679 = vsel %vm512, %v678, 0.0
        %680 = vadd.xlane.f32.xlu0 %v679
        %v681 = vpop.xlane.xlu0 %680
        %v682 = vrcp.pop %v681
        %v683 = vmul.f32 %v678, %v682
        %v684 = vpack.c.bf16 %v683, %v683
        %685 = vrot.lane.b32.xlu0 %v502, 56
        %v686 = vpop.permute.xlu0 %685
        %v688 = vsel %vm512, %v684, 0
        %v691 = vsel %vm576, %v686, 0
        %693 = vmatprep.subr.bf16.mxu0 0
        %694 = vmatpush1.bf16.msra.mxu0 0
        %695 = vmatprep.subr.bf16.mxu0 0
        %696 = vmatpush1.bf16.msra.mxu0 0
        %697 = vmatprep.subr.bf16.mxu0 0
        %698 = vmatpush1.bf16.msra.mxu0 0
        %699 = vmatprep.subr.bf16.mxu0 0
        %700 = vmatpush1.bf16.msra.mxu0 0
        %701 = vmatprep.subr.bf16.mxu0 0
        %702 = vmatpush1.bf16.msra.mxu0 0
        %703 = vmatprep.subr.bf16.mxu0 0
        %704 = vmatpush1.bf16.msra.mxu0 0
        %705 = vmatprep.subr.bf16.mxu0 0
        %706 = vmatpush1.bf16.msra.mxu0 0
        %707 = vmatprep.subr.bf16.mxu0 0
        %708 = vmatpush1.bf16.msra.mxu0 %v691
        %709 = vmatprep.subr.bf16.mxu0 0
        %710 = vmatpush2.bf16.msra.mxu0 0
        %711 = vmatprep.subr.bf16.mxu0 0
        %712 = vmatpush2.bf16.msra.mxu0 0
        %713 = vmatprep.subr.bf16.mxu0 0
        %714 = vmatpush2.bf16.msra.mxu0 0
        %715 = vmatprep.subr.bf16.mxu0 0
        %716 = vmatpush2.bf16.msra.mxu0 0
        %717 = vmatprep.subr.bf16.mxu0 0
        %718 = vmatpush2.bf16.msra.mxu0 0
        %719 = vmatprep.subr.bf16.mxu0 0
        %720 = vmatpush2.bf16.msra.mxu0 0
        %721 = vmatprep.subr.bf16.mxu0 0
        %722 = vmatpush2.bf16.msra.mxu0 0
        %723 = vmatprep.subr.bf16.mxu0 0
        %724 = vmatpush2.bf16.msra.mxu0 0
        %725 = vmatprep.mubr.bf16.mxu0 0
        %726 = vmatmul.mubr.bf16.gmra.mxu0 %v688
        %v727 = vpop.f32.mrf.mxu0
        %v728 = vadd.f32 0.0, %v727
        %v729 = vpop.f32.mrf.mxu0
        %v730 = vpop.f32.mrf.mxu0
        %v731 = vpop.f32.mrf.mxu0
        %732 = vdwg.mxu0
        %v733 = vpack.c.bf16 %v728, %v728
        %v735 = vunpack.c.l.b16 %v733
        %v736 = vpack.c.b16 %v735, %v735
        %737 = vrot.lane.b32.xlu0 %v736, 8
        %v738 = vpop.permute.xlu0 %737
        %vm740 = vcmask 126016
        %741 = vst.msk [vmem:[#allocation2] sm:$0xf] %vm740, %v738
        %742 = vrot.lane.b32.xlu0 %v502, 112
        %v743 = vpop.permute.xlu0 %742
        %744 = vrot.lane.b32.xlu0 %v502, 80
        %v745 = vpop.permute.xlu0 %744
        %v747 = vsel %vm512, %v743, 0
        %v750 = vsel %vm512, %v745, 0
        %752 = vmatprep.subr.bf16.mxu0 0
        %753 = vmatpush1.bf16.xpose.msra.mxu0 0
        %754 = vmatprep.subr.bf16.mxu0 0
        %755 = vmatpush1.bf16.xpose.msra.mxu0 0
        %756 = vmatprep.subr.bf16.mxu0 0
        %757 = vmatpush1.bf16.xpose.msra.mxu0 0
        %758 = vmatprep.subr.bf16.mxu0 0
        %759 = vmatpush1.bf16.xpose.msra.mxu0 0
        %760 = vmatprep.subr.bf16.mxu0 0
        %761 = vmatpush1.bf16.xpose.msra.mxu0 0
        %762 = vmatprep.subr.bf16.mxu0 0
        %763 = vmatpush1.bf16.xpose.msra.mxu0 0
        %764 = vmatprep.subr.bf16.mxu0 0
        %765 = vmatpush1.bf16.xpose.msra.mxu0 0
        %766 = vmatprep.subr.bf16.mxu0 0
        %767 = vmatpush1.bf16.xpose.msra.mxu0 %v750
        %768 = vmatprep.subr.bf16.mxu0 0
        %769 = vmatpush2.bf16.xpose.msra.mxu0 0
        %770 = vmatprep.subr.bf16.mxu0 0
        %771 = vmatpush2.bf16.xpose.msra.mxu0 0
        %772 = vmatprep.subr.bf16.mxu0 0
        %773 = vmatpush2.bf16.xpose.msra.mxu0 0
        %774 = vmatprep.subr.bf16.mxu0 0
        %775 = vmatpush2.bf16.xpose.msra.mxu0 0
        %776 = vmatprep.subr.bf16.mxu0 0
        %777 = vmatpush2.bf16.xpose.msra.mxu0 0
        %778 = vmatprep.subr.bf16.mxu0 0
        %779 = vmatpush2.bf16.xpose.msra.mxu0 0
        %780 = vmatprep.subr.bf16.mxu0 0
        %781 = vmatpush2.bf16.xpose.msra.mxu0 0
        %782 = vmatprep.subr.bf16.mxu0 0
        %783 = vmatpush2.bf16.xpose.msra.mxu0 0
        %784 = vmatprep.mubr.bf16.mxu0 0
        %785 = vmatmul.mubr.bf16.gmra.mxu0 %v747
        %v786 = vpop.f32.mrf.mxu0
        %v787 = vadd.f32 %v508, %v786
        %v788 = vpop.f32.mrf.mxu0
        %v789 = vpop.f32.mrf.mxu0
        %v790 = vpop.f32.mrf.mxu0
        %791 = vdwg.mxu0
        %v792 = vsel %vm512, %v787, -inf
        %793 = vmax.xlane.f32.xlu0 %v792
        %v794 = vpop.xlane.xlu0 %793
        %v795 = vsub.f32 %v787, %v794
        %v796 = vmul.f32 %v795, 1.442695
        %v797 = vpow.pop %v796
        %v798 = vsel %vm512, %v797, 0.0
        %799 = vadd.xlane.f32.xlu0 %v798
        %v800 = vpop.xlane.xlu0 %799
        %v801 = vrcp.pop %v800
        %v802 = vmul.f32 %v797, %v801
        %v803 = vpack.c.bf16 %v802, %v802
        %804 = vrot.lane.b32.xlu0 %v502, 48
        %v805 = vpop.permute.xlu0 %804
        %v807 = vsel %vm512, %v803, 0
        %v810 = vsel %vm576, %v805, 0
        %812 = vmatprep.subr.bf16.mxu0 0
        %813 = vmatpush1.bf16.msra.mxu0 0
        %814 = vmatprep.subr.bf16.mxu0 0
        %815 = vmatpush1.bf16.msra.mxu0 0
        %816 = vmatprep.subr.bf16.mxu0 0
        %817 = vmatpush1.bf16.msra.mxu0 0
        %818 = vmatprep.subr.bf16.mxu0 0
        %819 = vmatpush1.bf16.msra.mxu0 0
        %820 = vmatprep.subr.bf16.mxu0 0
        %821 = vmatpush1.bf16.msra.mxu0 0
        %822 = vmatprep.subr.bf16.mxu0 0
        %823 = vmatpush1.bf16.msra.mxu0 0
        %824 = vmatprep.subr.bf16.mxu0 0
        %825 = vmatpush1.bf16.msra.mxu0 0
        %826 = vmatprep.subr.bf16.mxu0 0
        %827 = vmatpush1.bf16.msra.mxu0 %v810
        %828 = vmatprep.subr.bf16.mxu0 0
        %829 = vmatpush2.bf16.msra.mxu0 0
        %830 = vmatprep.subr.bf16.mxu0 0
        %831 = vmatpush2.bf16.msra.mxu0 0
        %832 = vmatprep.subr.bf16.mxu0 0
        %833 = vmatpush2.bf16.msra.mxu0 0
        %834 = vmatprep.subr.bf16.mxu0 0
        %835 = vmatpush2.bf16.msra.mxu0 0
        %836 = vmatprep.subr.bf16.mxu0 0
        %837 = vmatpush2.bf16.msra.mxu0 0
        %838 = vmatprep.subr.bf16.mxu0 0
        %839 = vmatpush2.bf16.msra.mxu0 0
        %840 = vmatprep.subr.bf16.mxu0 0
        %841 = vmatpush2.bf16.msra.mxu0 0
        %842 = vmatprep.subr.bf16.mxu0 0
        %843 = vmatpush2.bf16.msra.mxu0 0
        %844 = vmatprep.mubr.bf16.mxu0 0
        %845 = vmatmul.mubr.bf16.gmra.mxu0 %v807
        %v846 = vpop.f32.mrf.mxu0
        %v847 = vadd.f32 0.0, %v846
        %v848 = vpop.f32.mrf.mxu0
        %v849 = vpop.f32.mrf.mxu0
        %v850 = vpop.f32.mrf.mxu0
        %851 = vdwg.mxu0
        %v852 = vpack.c.bf16 %v847, %v847
        %v854 = vunpack.c.l.b16 %v852
        %v855 = vpack.c.b16 %v854, %v854
        %856 = vrot.lane.b32.xlu0 %v855, 16
        %v857 = vpop.permute.xlu0 %856
        %vm859 = vcmask 191616
        %860 = vst.msk [vmem:[#allocation2] sm:$0xf] %vm859, %v857
        %861 = vrot.lane.b32.xlu0 %v502, 104
        %v862 = vpop.permute.xlu0 %861
        %863 = vrot.lane.b32.xlu0 %v502, 72
        %v864 = vpop.permute.xlu0 %863
        %v866 = vsel %vm512, %v862, 0
        %v869 = vsel %vm512, %v864, 0
        %871 = vmatprep.subr.bf16.mxu0 0
        %872 = vmatpush1.bf16.xpose.msra.mxu0 0
        %873 = vmatprep.subr.bf16.mxu0 0
        %874 = vmatpush1.bf16.xpose.msra.mxu0 0
        %875 = vmatprep.subr.bf16.mxu0 0
        %876 = vmatpush1.bf16.xpose.msra.mxu0 0
        %877 = vmatprep.subr.bf16.mxu0 0
        %878 = vmatpush1.bf16.xpose.msra.mxu0 0
        %879 = vmatprep.subr.bf16.mxu0 0
        %880 = vmatpush1.bf16.xpose.msra.mxu0 0
        %881 = vmatprep.subr.bf16.mxu0 0
        %882 = vmatpush1.bf16.xpose.msra.mxu0 0
        %883 = vmatprep.subr.bf16.mxu0 0
        %884 = vmatpush1.bf16.xpose.msra.mxu0 0
        %885 = vmatprep.subr.bf16.mxu0 0
        %886 = vmatpush1.bf16.xpose.msra.mxu0 %v869
        %887 = vmatprep.subr.bf16.mxu0 0
        %888 = vmatpush2.bf16.xpose.msra.mxu0 0
        %889 = vmatprep.subr.bf16.mxu0 0
        %890 = vmatpush2.bf16.xpose.msra.mxu0 0
        %891 = vmatprep.subr.bf16.mxu0 0
        %892 = vmatpush2.bf16.xpose.msra.mxu0 0
        %893 = vmatprep.subr.bf16.mxu0 0
        %894 = vmatpush2.bf16.xpose.msra.mxu0 0
        %895 = vmatprep.subr.bf16.mxu0 0
        %896 = vmatpush2.bf16.xpose.msra.mxu0 0
        %897 = vmatprep.subr.bf16.mxu0 0
        %898 = vmatpush2.bf16.xpose.msra.mxu0 0
        %899 = vmatprep.subr.bf16.mxu0 0
        %900 = vmatpush2.bf16.xpose.msra.mxu0 0
        %901 = vmatprep.subr.bf16.mxu0 0
        %902 = vmatpush2.bf16.xpose.msra.mxu0 0
        %903 = vmatprep.mubr.bf16.mxu0 0
        %904 = vmatmul.mubr.bf16.gmra.mxu0 %v866
        %v905 = vpop.f32.mrf.mxu0
        %v906 = vadd.f32 %v508, %v905
        %v907 = vpop.f32.mrf.mxu0
        %v908 = vpop.f32.mrf.mxu0
        %v909 = vpop.f32.mrf.mxu0
        %910 = vdwg.mxu0
        %v911 = vsel %vm512, %v906, -inf
        %912 = vmax.xlane.f32.xlu0 %v911
        %v913 = vpop.xlane.xlu0 %912
        %v914 = vsub.f32 %v906, %v913
        %v915 = vmul.f32 %v914, 1.442695
        %v916 = vpow.pop %v915
        %v917 = vsel %vm512, %v916, 0.0
        %918 = vadd.xlane.f32.xlu0 %v917
        %v919 = vpop.xlane.xlu0 %918
        %v920 = vrcp.pop %v919
        %v921 = vmul.f32 %v916, %v920
        %v922 = vpack.c.bf16 %v921, %v921
        %923 = vrot.lane.b32.xlu0 %v502, 40
        %v924 = vpop.permute.xlu0 %923
        %v926 = vsel %vm512, %v922, 0
        %v929 = vsel %vm576, %v924, 0
        %931 = vmatprep.subr.bf16.mxu0 0
        %932 = vmatpush1.bf16.msra.mxu0 0
        %933 = vmatprep.subr.bf16.mxu0 0
        %934 = vmatpush1.bf16.msra.mxu0 0
        %935 = vmatprep.subr.bf16.mxu0 0
        %936 = vmatpush1.bf16.msra.mxu0 0
        %937 = vmatprep.subr.bf16.mxu0 0
        %938 = vmatpush1.bf16.msra.mxu0 0
        %939 = vmatprep.subr.bf16.mxu0 0
        %940 = vmatpush1.bf16.msra.mxu0 0
        %941 = vmatprep.subr.bf16.mxu0 0
        %942 = vmatpush1.bf16.msra.mxu0 0
        %943 = vmatprep.subr.bf16.mxu0 0
        %944 = vmatpush1.bf16.msra.mxu0 0
        %945 = vmatprep.subr.bf16.mxu0 0
        %946 = vmatpush1.bf16.msra.mxu0 %v929
        %947 = vmatprep.subr.bf16.mxu0 0
        %948 = vmatpush2.bf16.msra.mxu0 0
        %949 = vmatprep.subr.bf16.mxu0 0
        %950 = vmatpush2.bf16.msra.mxu0 0
        %951 = vmatprep.subr.bf16.mxu0 0
        %952 = vmatpush2.bf16.msra.mxu0 0
        %953 = vmatprep.subr.bf16.mxu0 0
        %954 = vmatpush2.bf16.msra.mxu0 0
        %955 = vmatprep.subr.bf16.mxu0 0
        %956 = vmatpush2.bf16.msra.mxu0 0
        %957 = vmatprep.subr.bf16.mxu0 0
        %958 = vmatpush2.bf16.msra.mxu0 0
        %959 = vmatprep.subr.bf16.mxu0 0
        %960 = vmatpush2.bf16.msra.mxu0 0
        %961 = vmatprep.subr.bf16.mxu0 0
        %962 = vmatpush2.bf16.msra.mxu0 0
        %963 = vmatprep.mubr.bf16.mxu0 0
        %964 = vmatmul.mubr.bf16.gmra.mxu0 %v926
        %v965 = vpop.f32.mrf.mxu0
        %v966 = vadd.f32 0.0, %v965
        %v967 = vpop.f32.mrf.mxu0
        %v968 = vpop.f32.mrf.mxu0
        %v969 = vpop.f32.mrf.mxu0
        %970 = vdwg.mxu0
        %v971 = vpack.c.bf16 %v966, %v966
        %v973 = vunpack.c.l.b16 %v971
        %v974 = vpack.c.b16 %v973, %v973
        %975 = vrot.lane.b32.xlu0 %v974, 24
        %v976 = vpop.permute.xlu0 %975
        %vm978 = vcmask 257216
        %979 = vst.msk [vmem:[#allocation2] sm:$0xf] %vm978, %v976
        %v980 = vld [vmem:[#allocation2] sm:$0xf]
        %v981 = vld [vmem:[%s4] sm:$0xf]
        %v982 = vld [vmem:[%s4 + $0x4] sm:$0xf]
        %v983 = vld [vmem:[%s4 + $0x8] sm:$0xf]
        %v984 = vld [vmem:[%s4 + $0xc] sm:$0xf]
        %v985 = vld [vmem:[%s5] sm:$0x1]
        %v987 = vlaneseq
        %v988 = vshrl.u32 %v987, 7
        %v989 = vsub.s32 0, %v988
        %v990 = vrot.slane %v985, %v989
        %v996 = vunpack.c.l.b16 %v981
        %v997 = vunpack.c.l.b16 %v982
        %v998 = vunpack.c.l.b16 %v983
        %v999 = vunpack.c.l.b16 %v984
        %v1000 = vpack.c.b16 %v997, %v996
        %v1001 = vpack.c.b16 %v999, %v998
        %v1005 = vsel %vm413, %v980, 0
        %1007 = vmatprep.subr.bf16.mxu0 0
        %1008 = vmatpush1.bf16.msra.mxu0 0
        %1009 = vmatprep.subr.bf16.mxu0 0
        %1010 = vmatpush1.bf16.msra.mxu0 0
        %1011 = vmatprep.subr.bf16.mxu0 0
        %1012 = vmatpush1.bf16.msra.mxu0 0
        %1013 = vmatprep.subr.bf16.mxu0 0
        %1014 = vmatpush1.bf16.msra.mxu0 0
        %1015 = vmatprep.subr.bf16.mxu0 0
        %1016 = vmatpush1.bf16.msra.mxu0 0
        %1017 = vmatprep.subr.bf16.mxu0 0
        %1018 = vmatpush1.bf16.msra.mxu0 0
        %1019 = vmatprep.subr.bf16.mxu0 0
        %1020 = vmatpush1.bf16.msra.mxu0 %v1001
        %1021 = vmatprep.subr.bf16.mxu0 0
        %1022 = vmatpush1.bf16.msra.mxu0 %v1000
        %1023 = vmatprep.subr.bf16.mxu0 0
        %1024 = vmatpush2.bf16.msra.mxu0 0
        %1025 = vmatprep.subr.bf16.mxu0 0
        %1026 = vmatpush2.bf16.msra.mxu0 0
        %1027 = vmatprep.subr.bf16.mxu0 0
        %1028 = vmatpush2.bf16.msra.mxu0 0
        %1029 = vmatprep.subr.bf16.mxu0 0
        %1030 = vmatpush2.bf16.msra.mxu0 0
        %1031 = vmatprep.subr.bf16.mxu0 0
        %1032 = vmatpush2.bf16.msra.mxu0 0
        %1033 = vmatprep.subr.bf16.mxu0 0
        %1034 = vmatpush2.bf16.msra.mxu0 0
        %1035 = vmatprep.subr.bf16.mxu0 0
        %1036 = vmatpush2.bf16.msra.mxu0 0
        %1037 = vmatprep.subr.bf16.mxu0 0
        %1038 = vmatpush2.bf16.msra.mxu0 0
        %1039 = vmatprep.mubr.bf16.mxu0 0
        %1040 = vmatmul.mubr.bf16.gmra.mxu0 %v1005
        %v1041 = vpop.f32.mrf.mxu0
        %v1042 = vadd.f32 %v990, %v1041
        %v1043 = vpop.f32.mrf.mxu0
        %v1044 = vpop.f32.mrf.mxu0
        %v1045 = vpop.f32.mrf.mxu0
        %1046 = vdwg.mxu0
        %v1047 = vadd.f32 %v1042, %v410
        %v1048 = vld [vmem:[%s6] sm:$0x1]
        %v1049 = vld [vmem:[%s7] sm:$0x1]
        %v1050 = vsel %vm413, %v1047, 0.0
        %1051 = vadd.xlane.f32.xlu0 %v1050
        %v1052 = vpop.xlane.xlu0 %1051
        %v1053 = vmul.f32 %v1052, %v417
        %v1054 = vsub.f32 %v1047, %v1053
        %v1055 = vmul.f32 %v1054, %v1054
        %v1056 = vsel %vm413, %v1055, 0.0
        %1057 = vadd.xlane.f32.xlu0 %v1056
        %v1058 = vpop.xlane.xlu0 %1057
        %v1059 = vmul.f32 %v1058, %v417
        %v1060 = vadd.f32 %v1059, 1e-05
        %v1061 = vrsqrt.pop %v1060
        %v1062 = vmul.f32 %v1054, %v1061
        %v1064 = vlaneseq
        %v1065 = vshrl.u32 %v1064, 7
        %v1066 = vsub.s32 0, %v1065
        %v1067 = vrot.slane %v1048, %v1066
        %v1069 = vmul.f32 %v1062, %v1067
        %v1071 = vlaneseq
        %v1072 = vshrl.u32 %v1071, 7
        %v1073 = vsub.s32 0, %v1072
        %v1074 = vrot.slane %v1049, %v1073
        %v1076 = vadd.f32 %v1069, %v1074
        %v1077 = vpack.c.bf16 %v1076, %v1076
        %v1078 = vld [vmem:[%s8] sm:$0xf]
        %v1079 = vld [vmem:[%s8 + $0x4] sm:$0xf]
        %v1080 = vld [vmem:[%s8 + $0x8] sm:$0xf]
        %v1081 = vld [vmem:[%s8 + $0xc] sm:$0xf]
        %v1082 = vld [vmem:[%s9] sm:$0x1]
        %v1084 = vlaneseq
        %v1085 = vshrl.u32 %v1084, 7
        %v1086 = vsub.s32 0, %v1085
        %v1087 = vrot.slane %v1082, %v1086
        %v1093 = vunpack.c.l.b16 %v1078
        %v1094 = vunpack.c.l.b16 %v1079
        %v1095 = vunpack.c.l.b16 %v1080
        %v1096 = vunpack.c.l.b16 %v1081
        %v1097 = vpack.c.b16 %v1094, %v1093
        %v1098 = vpack.c.b16 %v1096, %v1095
        %v1102 = vsel %vm413, %v1077, 0
        %1104 = vmatprep.subr.bf16.mxu0 0
        %1105 = vmatpush1.bf16.msra.mxu0 0
        %1106 = vmatprep.subr.bf16.mxu0 0
        %1107 = vmatpush1.bf16.msra.mxu0 0
        %1108 = vmatprep.subr.bf16.mxu0 0
        %1109 = vmatpush1.bf16.msra.mxu0 0
        %1110 = vmatprep.subr.bf16.mxu0 0
        %1111 = vmatpush1.bf16.msra.mxu0 0
        %1112 = vmatprep.subr.bf16.mxu0 0
        %1113 = vmatpush1.bf16.msra.mxu0 0
        %1114 = vmatprep.subr.bf16.mxu0 0
        %1115 = vmatpush1.bf16.msra.mxu0 0
        %1116 = vmatprep.subr.bf16.mxu0 0
        %1117 = vmatpush1.bf16.msra.mxu0 %v1098
        %1118 = vmatprep.subr.bf16.mxu0 0
        %1119 = vmatpush1.bf16.msra.mxu0 %v1097
        %1120 = vmatprep.subr.bf16.mxu0 0
        %1121 = vmatpush2.bf16.msra.mxu0 0
        %1122 = vmatprep.subr.bf16.mxu0 0
        %1123 = vmatpush2.bf16.msra.mxu0 0
        %1124 = vmatprep.subr.bf16.mxu0 0
        %1125 = vmatpush2.bf16.msra.mxu0 0
        %1126 = vmatprep.subr.bf16.mxu0 0
        %1127 = vmatpush2.bf16.msra.mxu0 0
        %1128 = vmatprep.subr.bf16.mxu0 0
        %1129 = vmatpush2.bf16.msra.mxu0 0
        %1130 = vmatprep.subr.bf16.mxu0 0
        %1131 = vmatpush2.bf16.msra.mxu0 0
        %1132 = vmatprep.subr.bf16.mxu0 0
        %1133 = vmatpush2.bf16.msra.mxu0 0
        %1134 = vmatprep.subr.bf16.mxu0 0
        %1135 = vmatpush2.bf16.msra.mxu0 0
        %1136 = vmatprep.mubr.bf16.mxu0 0
        %1137 = vmatmul.mubr.bf16.gmra.mxu0 %v1102
        %v1138 = vpop.f32.mrf.mxu0
        %v1139 = vadd.f32 %v1087, %v1138
        %v1140 = vpop.f32.mrf.mxu0
        %v1141 = vpop.f32.mrf.mxu0
        %v1142 = vpop.f32.mrf.mxu0
        %1143 = vdwg.mxu0
        %v1144 = vmul.f32 %v1139, 0.5
        %v1145 = vmul.f32 %v1139, 0.044715
        %v1146 = vmul.f32 %v1145, %v1139
        %v1147 = vmul.f32 %v1146, %v1139
        %v1148 = vadd.f32 %v1139, %v1147
        %v1149 = vmul.f32 %v1148, 0.7978846
        %v1150 = vtanh.pop %v1149
        %v1151 = vadd.f32 %v1150, 1.0
        %v1152 = vmul.f32 %v1144, %v1151
        %v1153 = vpack.c.bf16 %v1152, %v1152
        %v1154 = vld [vmem:[%s10] sm:$0xf]
        %v1155 = vld [vmem:[%s10 + $0x4] sm:$0xf]
        %v1156 = vld [vmem:[%s10 + $0x8] sm:$0xf]
        %v1157 = vld [vmem:[%s10 + $0xc] sm:$0xf]
        %v1158 = vld [vmem:[%s10 + $0x10] sm:$0xf]
        %v1159 = vld [vmem:[%s10 + $0x14] sm:$0xf]
        %v1160 = vld [vmem:[%s10 + $0x18] sm:$0xf]
        %v1161 = vld [vmem:[%s10 + $0x1c] sm:$0xf]
        %v1162 = vld [vmem:[%s10 + $0x20] sm:$0xf]
        %v1163 = vld [vmem:[%s10 + $0x24] sm:$0xf]
        %v1164 = vld [vmem:[%s10 + $0x28] sm:$0xf]
        %v1165 = vld [vmem:[%s10 + $0x2c] sm:$0xf]
        %v1166 = vld [vmem:[%s10 + $0x30] sm:$0xf]
        %v1167 = vld [vmem:[%s10 + $0x34] sm:$0xf]
        %v1168 = vld [vmem:[%s10 + $0x38] sm:$0xf]
        %v1169 = vld [vmem:[%s10 + $0x3c] sm:$0xf]
        %v1170 = vld [vmem:[%s11] sm:$0x1]
        %v1172 = vlaneseq
        %v1173 = vshrl.u32 %v1172, 7
        %v1174 = vsub.s32 0, %v1173
        %v1175 = vrot.slane %v1170, %v1174
        %v1193 = vunpack.c.l.b16 %v1154
        %v1194 = vunpack.c.l.b16 %v1155
        %v1195 = vunpack.c.l.b16 %v1156
        %v1196 = vunpack.c.l.b16 %v1157
        %v1197 = vunpack.c.l.b16 %v1158
        %v1198 = vunpack.c.l.b16 %v1159
        %v1199 = vunpack.c.l.b16 %v1160
        %v1200 = vunpack.c.l.b16 %v1161
        %v1201 = vunpack.c.l.b16 %v1162
        %v1202 = vunpack.c.l.b16 %v1163
        %v1203 = vunpack.c.l.b16 %v1164
        %v1204 = vunpack.c.l.b16 %v1165
        %v1205 = vunpack.c.l.b16 %v1166
        %v1206 = vunpack.c.l.b16 %v1167
        %v1207 = vunpack.c.l.b16 %v1168
        %v1208 = vunpack.c.l.b16 %v1169
        %v1209 = vpack.c.b16 %v1194, %v1193
        %v1210 = vpack.c.b16 %v1196, %v1195
        %v1211 = vpack.c.b16 %v1198, %v1197
        %v1212 = vpack.c.b16 %v1200, %v1199
        %v1213 = vpack.c.b16 %v1202, %v1201
        %v1214 = vpack.c.b16 %v1204, %v1203
        %v1215 = vpack.c.b16 %v1206, %v1205
        %v1216 = vpack.c.b16 %v1208, %v1207
        %1225 = vmatprep.subr.bf16.mxu0 0
        %1226 = vmatpush1.bf16.msra.mxu0 %v1216
        %1227 = vmatprep.subr.bf16.mxu0 0
        %1228 = vmatpush1.bf16.msra.mxu0 %v1215
        %1229 = vmatprep.subr.bf16.mxu0 0
        %1230 = vmatpush1.bf16.msra.mxu0 %v1214
        %1231 = vmatprep.subr.bf16.mxu0 0
        %1232 = vmatpush1.bf16.msra.mxu0 %v1213
        %1233 = vmatprep.subr.bf16.mxu0 0
        %1234 = vmatpush1.bf16.msra.mxu0 %v1212
        %1235 = vmatprep.subr.bf16.mxu0 0
        %1236 = vmatpush1.bf16.msra.mxu0 %v1211
        %1237 = vmatprep.subr.bf16.mxu0 0
        %1238 = vmatpush1.bf16.msra.mxu0 %v1210
        %1239 = vmatprep.subr.bf16.mxu0 0
        %1240 = vmatpush1.bf16.msra.mxu0 %v1209
        %1241 = vmatprep.subr.bf16.mxu0 0
        %1242 = vmatpush2.bf16.msra.mxu0 0
        %1243 = vmatprep.subr.bf16.mxu0 0
        %1244 = vmatpush2.bf16.msra.mxu0 0
        %1245 = vmatprep.subr.bf16.mxu0 0
        %1246 = vmatpush2.bf16.msra.mxu0 0
        %1247 = vmatprep.subr.bf16.mxu0 0
        %1248 = vmatpush2.bf16.msra.mxu0 0
        %1249 = vmatprep.subr.bf16.mxu0 0
        %1250 = vmatpush2.bf16.msra.mxu0 0
        %1251 = vmatprep.subr.bf16.mxu0 0
        %1252 = vmatpush2.bf16.msra.mxu0 0
        %1253 = vmatprep.subr.bf16.mxu0 0
        %1254 = vmatpush2.bf16.msra.mxu0 0
        %1255 = vmatprep.subr.bf16.mxu0 0
        %1256 = vmatpush2.bf16.msra.mxu0 0
        %1257 = vmatprep.mubr.bf16.mxu0 0
        %1258 = vmatmul.mubr.bf16.gmra.mxu0 %v1153
        %v1259 = vpop.f32.mrf.mxu0
        %v1260 = vadd.f32 %v1175, %v1259
        %v1261 = vpop.f32.mrf.mxu0
        %v1262 = vpop.f32.mrf.mxu0
        %v1263 = vpop.f32.mrf.mxu0
        %1264 = vdwg.mxu0
        %v1265 = vadd.f32 %v1260, %v1047
        %1266 = vst.msk [vmem:[%s404] sm:$0xff] %vm413, %v1265
        %s1267 = sand.u32 %s291, 1
        %s1268 = scalar_lea.sflag [#allocation4], %s1267
        %s1269 = sand.u32 %s291, 1
        %s1270 = smul.addr %s1269, 8
        %s1271 = scalar_lea.vmem [#allocation3], %s1270
        // Predicated region
        $region69: #{tpu_custom_call.1} parent=67 // pred_check
          %p1272 = pneg %p301
        $region70: #{tpu_custom_call.1} parent=67 // pred_check_branch
          %1274 = sbr.rel (%p1272) target = $region72
        $region71: #{tpu_custom_call.1} parent=67 // pred_region
          %s1276 = ssub.s32 128, 128
          %1277 = vsyncadd %s1268, %s1276
          %s1278 = smul.addr %s26, 128
          %s1279 = scalar_lea.hbm %s12, %s1278
          %s1281 = sshll.u32 %s1271, 4
          %s1282 = int_to_ptr.vmem [resolvable:$true] %s1281
          %1284 = dma.vmem_to_hbm [thread:$0]  %s1282, 128, %s1279, %s1268
        $region72: #{tpu_custom_call.1} parent=67 // pred_fallthru
          _
      $region68: #{tpu_custom_call.1} parent=5 // pred_fallthru
        _
      %p1285 = scmp.le.s32.totalorder 2, %s21
      // Predicated region
      $region73: #{tpu_custom_call.1} parent=5 // pred_check
        %p1286 = pneg %p1285
      $region74: #{tpu_custom_call.1} parent=5 // pred_check_branch
        %1288 = sbr.rel (%p1286) target = $region76
      $region75: #{tpu_custom_call.1} parent=5 // pred_region
        %s1289 = ssub.s32 %s21, 2
        // Predicated region
        $region77: #{tpu_custom_call.1} parent=75 // pred_check
          %p1290 = pneg %p307
        $region78: #{tpu_custom_call.1} parent=75 // pred_check_branch
          %1292 = sbr.rel (%p1290) target = $region80
        $region79: #{tpu_custom_call.1} parent=75 // pred_region
          %s1293 = sand.u32 %s292, 1
          %s1294 = scalar_lea.sflag [#allocation4], %s1293
          %s1295 = sand.u32 %s292, 1
          %s1296 = smul.addr %s1295, 8
          %s1297 = scalar_lea.vmem [#allocation3], %s1296
          %1298 = dma.done %s1294, 128
        $region80: #{tpu_custom_call.1} parent=75 // pred_fallthru
          _
      $region76: #{tpu_custom_call.1} parent=5 // pred_fallthru
        _
    $region6: #{tpu_custom_call.1} parent=1 // loop_footer
      %s25 = sadd.s32 1, %s21
    $region7: #{tpu_custom_call.1} parent=1 // loop_footer_branch
      %20 = sbr.rel target = $region3
    $region8: #{tpu_custom_call.1} parent=1 // loop_exit
      _
    %1299 = vsyncpa [#allocation4], 1
    %s1300 = scalar_lea.sflag [#allocation4], 1
    %1301 = vsyncpa %s1300, 1

</llo_original>
